<compile_context>
chip_gen: v7x
topology: tpu7x:2x2x1
jax: 0.10.0
libtpu: 0.0.40
codegen_flags: <defaults>
</compile_context>

<pallas_src>
from functools import partial

import jax
import jax.numpy as jnp
from jax.experimental import pallas as pl
from jax.experimental.pallas import tpu as pltpu

LEAKY_SLOPE = 0.01   # nn.LeakyReLU() default negative_slope
BN_EPS = 1e-5        # nn.BatchNorm2d default eps


# ----------------------------------------------------------------------------
# Pallas kernel: per-(batch, point-tile) EdgeConv forward
# ----------------------------------------------------------------------------
def edgeconv_kernel(x_ref, xn_ref,
                    wctr_ref, bctr_ref,   # fused centre path   [C, 3C+Co], [1, 3C+Co]
                    wnb_ref, bnb_ref,     # fused lin02/lin12   [C, 3C],    [1, 3C]
                    w2_ref, b2_ref,       # linear2             [2C, C],    [1, C]
                    wc1_ref, sh1_ref,     # conv1*s1, BN1 shift [C, Co],    [1, Co]
                    out_ref,              # [1, Co, TN]
                    *, ew):
    f32, bf16 = jnp.float32, jnp.bfloat16
    K, TN, C = xn_ref.shape[1], xn_ref.shape[2], xn_ref.shape[3]
    Co = out_ref.shape[1]
    C2, C3 = 2 * C, 3 * C

    # ---- centre-point path: ONE fused matmul on x ----------------------------
    zc = jnp.dot(x_ref[0], wctr_ref[...], preferred_element_type=f32) + bctr_ref[...]
    x1 = zc[:, :C]                                   # linear01(x)                 [TN, C]
    x2 = zc[:, C:C3]                                 # linear11(linear01(x))       [TN, 2C]
    y2 = jnp.maximum(zc[:, C3:], 0.0)                # BN2-folded conv2 + ReLU     [TN, Co]

    # ---- neighbour path: all K neighbours in one matmul front-end ------------
    xnf = xn_ref[0].reshape(K * TN, C)                                            # bf16
    zn = jnp.dot(xnf, wnb_ref[...], preferred_element_type=f32) + bnb_ref[...]    # [K*TN, 3C]
    zn = zn.astype(ew).reshape(K, TN, C3)
    xn1 = zn[:, :, :C]                               # linear02(xn)
    xn2 = zn[:, :, C:]                               # linear12(linear02(xn))

    # x_2 + x_neighbour_2 -> LeakyReLU -> linear2 (broadcast x2 inside the add,
    # no materialised K-tiled copy of the centre features)
    h = x2.astype(ew)[None, :, :] + xn2                                           # [K, TN, 2C]
    h = jnp.where(h >= 0, h, LEAKY_SLOPE * h)
    c = jnp.dot(h.reshape(K * TN, C2).astype(bf16), w2_ref[...],
                preferred_element_type=f32) + b2_ref[...]                         # [K*TN, C]
    c = c.astype(ew).reshape(K, TN, C)

    # edge feature -> conv1 (BN1 scale folded into the weight) + shift + ReLU
    e = (xn1 - x1.astype(ew)[None, :, :]) * c                                     # [K, TN, C]
    y1 = jnp.dot(e.reshape(K * TN, C).astype(bf16), wc1_ref[...],
                 preferred_element_type=f32)                                      # [K*TN, Co]
    y1 = jnp.maximum(y1 + sh1_ref[...], 0.0).reshape(K, TN, Co)

    # max over k (conv2 branch is constant over k: hoisted out of the reduction)
    acc = y2 + jnp.max(y1, axis=0)                                                # [TN, Co]
    out_ref[0] = acc.T.astype(out_ref.dtype)         # lane-dense [Co, TN] store


# ----------------------------------------------------------------------------
# JAX glue: kNN graph, weight folding/fusion, pallas_call wiring
# ----------------------------------------------------------------------------
def knn_indices(x, k):
    """Feature-space kNN. x: [B, C, N] -> idx [B, N, k]."""
    inner = jnp.einsum('bcn,bcm->bnm', x, x)
    sq = jnp.sum(x * x, axis=1)
    neg_dist = 2.0 * inner - sq[:, :, None] - sq[:, None, :]
    return jax.lax.top_k(neg_dist, k)[1]


def gather_neighbours(xt, idx):
    """xt: [B, N, C], idx: [B, N, k] -> neighbour features [B, N, k, C] (reference only)."""
    return jax.vmap(lambda xb, ib: xb[ib])(xt, idx)


def init_params(key, in_channel, out_channel):
    """Deterministic synthetic parameters matching the module's __init__ shapes."""
    C, Co = in_channel, out_channel
    ks = jax.random.split(key, 16)

    def lin(k, out_f, in_f):
        kw, kb = jax.random.split(k)
        bound = 1.0 / jnp.sqrt(in_f)
        w = jax.random.uniform(kw, (out_f, in_f), jnp.float32, -bound, bound)
        b = jax.random.uniform(kb, (out_f,), jnp.float32, -bound, bound)
        return w, b

    p = {}
    p['w01'], p['b01'] = lin(ks[0], C, C)
    p['w02'], p['b02'] = lin(ks[1], C, C)
    p['w11'], p['b11'] = lin(ks[2], 2 * C, C)
    p['w12'], p['b12'] = lin(ks[3], 2 * C, C)
    p['w2'],  p['b2']  = lin(ks[4], C, 2 * C)
    cb = 1.0 / jnp.sqrt(C)
    p['wc1'] = jax.random.uniform(ks[5], (Co, C), jnp.float32, -cb, cb)  # Conv2d(C,Co,1,bias=False)
    p['wc2'] = jax.random.uniform(ks[6], (Co, C), jnp.float32, -cb, cb)
    # BatchNorm2d eval-mode running stats (deterministic).
    p['gamma1'] = 1.0 + 0.1 * jax.random.normal(ks[7], (Co,), jnp.float32)
    p['beta1']  = 0.1 * jax.random.normal(ks[8], (Co,), jnp.float32)
    p['mean1']  = 0.1 * jax.random.normal(ks[9], (Co,), jnp.float32)
    p['var1']   = 1.0 + 0.1 * jax.random.uniform(ks[10], (Co,), jnp.float32)
    p['gamma2'] = 1.0 + 0.1 * jax.random.normal(ks[11], (Co,), jnp.float32)
    p['beta2']  = 0.1 * jax.random.normal(ks[12], (Co,), jnp.float32)
    p['mean2']  = 0.1 * jax.random.normal(ks[13], (Co,), jnp.float32)
    p['var2']   = 1.0 + 0.1 * jax.random.uniform(ks[14], (Co,), jnp.float32)
    return p


def fold_and_fuse_params(params):
    """Fold eval-mode BN into scale/shift; fuse & pre-transpose weights (bf16)."""
    f32, bf16 = jnp.float32, jnp.bfloat16
    w01, b01 = params['w01'], params['b01']
    w02, b02 = params['w02'], params['b02']
    w11, b11 = params['w11'], params['b11']
    w12, b12 = params['w12'], params['b12']
    w2,  b2  = params['w2'],  params['b2']
    wc1, wc2 = params['wc1'], params['wc2']

    s1 = params['gamma1'] / jnp.sqrt(params['var1'] + BN_EPS)
    sh1 = params['beta1'] - params['mean1'] * s1
    s2 = params['gamma2'] / jnp.sqrt(params['var2'] + BN_EPS)
    sh2 = params['beta2'] - params['mean2'] * s2

    # Centre path fully fused: zc = x @ Wctr + bctr with
    #   zc[:, :C]   = linear01(x)                 zc[:, C:3C] = linear11(linear01(x))
    #   zc[:, 3C:]  = s2 * conv2(linear01(x)) + sh2          (BN2 folded, pre-ReLU)
    wctr = jnp.concatenate([w01.T, (w11 @ w01).T, ((wc2 @ w01) * s2[:, None]).T], axis=1)
    bctr = jnp.concatenate([b01, w11 @ b01 + b11, s2 * (wc2 @ b01) + sh2])

    # Neighbour front-end fused: zn[:, :C] = linear02(xn), zn[:, C:] = linear12(linear02(xn))
    wnb = jnp.concatenate([w02.T, (w12 @ w02).T], axis=1)
    bnb = jnp.concatenate([b02, w12 @ b02 + b12])

    # conv1 with BN1 scale folded into the weight; shift stays a separate pre-ReLU add.
    wc1s = (wc1 * s1[:, None]).T

    def row(v):
        return v.reshape(1, -1).astype(f32)

    return [
        wctr.astype(bf16), row(bctr),
        wnb.astype(bf16),  row(bnb),
        w2.T.astype(bf16), row(b2),
        wc1s.astype(bf16), row(sh1),
    ]


def _elementwise_dtype():
    """bf16 elementwise chain where the VPU has native bf16 (v6e/v7x), else f32 (v5e)."""
    try:
        kind = jax.devices()[0].device_kind.lower()
    except Exception:
        return jnp.float32
    if any(tag in kind for tag in ("v6", "v7", "7x")):
        return jnp.bfloat16
    return jnp.float32


def _vmem_limit_bytes():
    """~96 MiB on 128 MiB chips (v5e/v6e), ~48 MiB on 64 MiB chips (v7x)."""
    try:
        cap = int(pltpu.get_tpu_info().vmem_capacity_bytes)
    except Exception:
        cap = 64 * 1024 * 1024
    return min(96 * 1024 * 1024, (cap * 3) // 4)


def _pick_tile_n(n, k, c, co, budget_bytes):
    """Largest TN (multiple of 128, dividing N padded to 128) whose K-expanded
    f32 intermediates (~4*K*TN*(9C+2Co) bytes) fit inside the footprint budget."""
    n128 = pl.cdiv(n, 128) * 128
    for t in (1024, 512, 256, 128):
        if n128 % t == 0 and 4 * k * t * (9 * c + 2 * co) <= budget_bytes:
            return t
    return 128


def edge_conv_forward(x, params, k, tile_n=None):
    """x: [B, C, N]  ->  [B, Cout, N]  (matches EdgeConv.forward, eval-mode BN)."""
    B, C, N = x.shape
    Co = params['wc1'].shape[0]
    bf16 = jnp.bfloat16

    # kNN graph construction (data-dependent top-k) stays in XLA glue.
    # Gather directly into k-major order (transpose the tiny idx, not the big
    # feature tensor): xn is [B, K, N, C] bf16 with no extra HBM transpose pass.
    idx = knn_indices(x, k)                                               # [B, N, k]
    xt = jnp.transpose(x, (0, 2, 1)).astype(bf16)                         # [B, N, C]
    idx_km = jnp.transpose(idx, (0, 2, 1))                                # [B, k, N]
    xn = jax.vmap(lambda xb, ib: xb[ib])(xt, idx_km)                      # [B, k, N, C]

    weight_args = fold_and_fuse_params(params)

    vmem_limit = _vmem_limit_bytes()
    TN = tile_n if tile_n is not None else _pick_tile_n(N, k, C, Co, vmem_limit // 2)
    assert TN % 128 == 0, "TN must be a multiple of 128 for lane-dense stores"

    # Pad the point axis to a multiple of TN (no TN=N fallback); slice output back.
    Np = pl.cdiv(N, TN) * TN
    if Np != N:
        xt = jnp.pad(xt, ((0, 0), (0, Np - N), (0, 0)))
        xn = jnp.pad(xn, ((0, 0), (0, 0), (0, Np - N), (0, 0)))

    def const_spec(a):
        nd = a.ndim
        return pl.BlockSpec(a.shape, lambda b, n, _nd=nd: (0,) * _nd)

    in_specs = [
        pl.BlockSpec((1, TN, C), lambda b, n: (b, n, 0)),                 # x tile (bf16)
        pl.BlockSpec((1, k, TN, C), lambda b, n: (b, 0, n, 0)),           # k-major neighbour tile
    ] + [const_spec(a) for a in weight_args]
    # NOTE: if profiling on v5e shows the neighbour-tile DMA exposed, add
    # pipeline_mode=pl.Buffered(3) on in_specs[1].

    # Advisory cost estimate so XLA overlaps the kNN/gather glue with the kernel.
    mm_flops = 2 * B * (k * Np * C * (5 * C + Co) + Np * C * (3 * C + Co))
    bytes_acc = (2 * B * Np * C * (k + 1) + 4 * B * Co * Np
                 + sum(int(a.size) * a.dtype.itemsize for a in weight_args))
    cost = pl.CostEstimate(flops=int(mm_flops), transcendentals=0,
                           bytes_accessed=int(bytes_acc))

    out = pl.pallas_call(
        partial(edgeconv_kernel, ew=_elementwise_dtype()),
        out_shape=jax.ShapeDtypeStruct((B, Co, Np), jnp.float32),
        grid=(B, Np // TN),
        in_specs=in_specs,
        out_specs=pl.BlockSpec((1, Co, TN), lambda b, n: (b, 0, n)),      # lane-dense [Co, TN]
        compiler_params=pltpu.CompilerParams(
            dimension_semantics=("parallel", "parallel"),
            vmem_limit_bytes=vmem_limit),
        cost_estimate=cost,
    )(xt, xn, *weight_args)

    return out[..., :N] if Np != N else out                              # [B, Cout, N]


# ----------------------------------------------------------------------------
# Pure-JAX f32 reference (mirrors EdgeConv.forward, eval-mode BatchNorm)
# ----------------------------------------------------------------------------
def edge_conv_reference(x, params, k):
    xt = jnp.transpose(x, (0, 2, 1))                                      # [B, N, C]
    idx = knn_indices(x, k)
    xn = gather_neighbours(xt, idx)                                       # [B, N, k, C]

    x1 = xt @ params['w01'].T + params['b01']                             # [B, N, C]
    xn1 = xn @ params['w02'].T + params['b02']                            # [B, N, k, C]
    x2 = x1 @ params['w11'].T + params['b11']                             # [B, N, 2C]
    xn2 = xn1 @ params['w12'].T + params['b12']                           # [B, N, k, 2C]
    h = x2[:, :, None, :] + xn2
    h = jnp.where(h >= 0, h, LEAKY_SLOPE * h)
    c = h @ params['w2'].T + params['b2']                                 # [B, N, k, C]
    e = (xn1 - x1[:, :, None, :]) * c                                     # [B, N, k, C]

    s1 = params['gamma1'] / jnp.sqrt(params['var1'] + BN_EPS)
    sh1 = params['beta1'] - params['mean1'] * s1
    s2 = params['gamma2'] / jnp.sqrt(params['var2'] + BN_EPS)
    sh2 = params['beta2'] - params['mean2'] * s2
    y1 = jnp.maximum((e @ params['wc1'].T) * s1 + sh1, 0.0)               # [B, N, k, Co]
    y2 = jnp.maximum((x1 @ params['wc2'].T) * s2 + sh2, 0.0)              # [B, N, Co]
    out = jnp.max(y2[:, :, None, :] + y1, axis=2)                         # [B, N, Co]
    return jnp.transpose(out, (0, 2, 1))                                  # [B, Cout, N]


if __name__ == "__main__":
    B, C, N, K, Cout = 2, 8, 16, 4, 16
    x = jax.random.normal(jax.random.PRNGKey(0), (B, C, N), jnp.float32)
    params = init_params(jax.random.PRNGKey(42), C, Cout)

    out = jax.block_until_ready(edge_conv_forward(x, params, K))
    assert out.shape == (B, Cout, N), out.shape
    assert bool(jnp.all(jnp.isfinite(out)))

    ref = edge_conv_reference(x, params, K)
    max_err = float(jnp.max(jnp.abs(out - ref)))
    assert max_err < 1e-1, f"kernel/reference mismatch: max abs err = {max_err}"
    print("KERNEL_OK")
</pallas_src>

<mosaic_0001>
module attributes {stable_mosaic.version = 11 : i64} {
  func.func @edgeconv_kernel(%arg0: i32, %arg1: i32, %arg2: memref<1x128x8xbf16, #tpu.memory_space<vmem>>, %arg3: memref<1x4x128x8xbf16, #tpu.memory_space<vmem>>, %arg4: memref<8x40xbf16, #tpu.memory_space<vmem>>, %arg5: memref<1x40xf32, #tpu.memory_space<vmem>>, %arg6: memref<8x24xbf16, #tpu.memory_space<vmem>>, %arg7: memref<1x24xf32, #tpu.memory_space<vmem>>, %arg8: memref<16x8xbf16, #tpu.memory_space<vmem>>, %arg9: memref<1x8xf32, #tpu.memory_space<vmem>>, %arg10: memref<8x16xbf16, #tpu.memory_space<vmem>>, %arg11: memref<1x16xf32, #tpu.memory_space<vmem>>, %arg12: memref<1x16x128xf32, #tpu.memory_space<vmem>>) attributes {dimension_semantics = [#tpu.dimension_semantics<parallel>, #tpu.dimension_semantics<parallel>], iteration_bounds = array<i64: 2, 1>, scalar_prefetch = 0 : i64, scratch_operands = 0 : i64, tpu.core_type = #tpu.core_type<tc>, window_params = [{transform_indices = @transform_0, window_bounds = array<i64: 1, 128, 8>}, {transform_indices = @transform_1, window_bounds = array<i64: 1, 4, 128, 8>}, {pipeline_mode = #tpu.pipeline_mode<synchronous>, transform_indices = @transform_2, window_bounds = array<i64: 8, 40>}, {pipeline_mode = #tpu.pipeline_mode<synchronous>, transform_indices = @transform_3, window_bounds = array<i64: 1, 40>}, {pipeline_mode = #tpu.pipeline_mode<synchronous>, transform_indices = @transform_4, window_bounds = array<i64: 8, 24>}, {pipeline_mode = #tpu.pipeline_mode<synchronous>, transform_indices = @transform_5, window_bounds = array<i64: 1, 24>}, {pipeline_mode = #tpu.pipeline_mode<synchronous>, transform_indices = @transform_6, window_bounds = array<i64: 16, 8>}, {pipeline_mode = #tpu.pipeline_mode<synchronous>, transform_indices = @transform_7, window_bounds = array<i64: 1, 8>}, {pipeline_mode = #tpu.pipeline_mode<synchronous>, transform_indices = @transform_8, window_bounds = array<i64: 8, 16>}, {pipeline_mode = #tpu.pipeline_mode<synchronous>, transform_indices = @transform_9, window_bounds = array<i64: 1, 16>}, {transform_indices = @transform_10, window_bounds = array<i64: 1, 16, 128>}]} {
    %c0 = arith.constant 0 : index
    %c0_0 = arith.constant 0 : index
    %c0_1 = arith.constant 0 : index
    %0 = vector.load %arg2[%c0, %c0_0, %c0_1] : memref<1x128x8xbf16, #tpu.memory_space<vmem>>, vector<1x128x8xbf16>
    %1 = vector.shape_cast %0 : vector<1x128x8xbf16> to vector<128x8xbf16>
    %c0_2 = arith.constant 0 : index
    %c0_3 = arith.constant 0 : index
    %2 = vector.load %arg4[%c0_2, %c0_3] : memref<8x40xbf16, #tpu.memory_space<vmem>>, vector<8x40xbf16>
    %cst = arith.constant dense<0.000000e+00> : vector<128x40xf32>
    %3 = tpu.matmul %1, %2, %cst {dimension_numbers = #tpu.dot_dimension_numbers<[1], [0], [0], [1], [0, 0, 1, 1], [], []>} : vector<128x8xbf16>, vector<8x40xbf16>, vector<128x40xf32> -> vector<128x40xf32>
    %c0_4 = arith.constant 0 : index
    %c0_5 = arith.constant 0 : index
    %4 = vector.load %arg5[%c0_4, %c0_5] : memref<1x40xf32, #tpu.memory_space<vmem>>, vector<1x40xf32>
    %5 = vector.broadcast %4 : vector<1x40xf32> to vector<128x40xf32>
    %6 = arith.addf %3, %5 : vector<128x40xf32>
    %7 = vector.extract_strided_slice %6 {offsets = [0, 0], sizes = [128, 8], strides = [1, 1]} : vector<128x40xf32> to vector<128x8xf32>
    %8 = vector.extract_strided_slice %6 {offsets = [0, 8], sizes = [128, 16], strides = [1, 1]} : vector<128x40xf32> to vector<128x16xf32>
    %9 = vector.extract_strided_slice %6 {offsets = [0, 24], sizes = [128, 16], strides = [1, 1]} : vector<128x40xf32> to vector<128x16xf32>
    %cst_6 = arith.constant 0.000000e+00 : f32
    %10 = vector.broadcast %cst_6 : f32 to vector<128x16xf32>
    %11 = arith.maximumf %9, %10 : vector<128x16xf32>
    %c0_7 = arith.constant 0 : index
    %c0_8 = arith.constant 0 : index
    %c0_9 = arith.constant 0 : index
    %c0_10 = arith.constant 0 : index
    %12 = vector.load %arg3[%c0_7, %c0_8, %c0_9, %c0_10] : memref<1x4x128x8xbf16, #tpu.memory_space<vmem>>, vector<1x4x128x8xbf16>
    %13 = vector.shape_cast %12 : vector<1x4x128x8xbf16> to vector<4x128x8xbf16>
    %14 = vector.shape_cast %13 : vector<4x128x8xbf16> to vector<512x8xbf16>
    %c0_11 = arith.constant 0 : index
    %c0_12 = arith.constant 0 : index
    %15 = vector.load %arg6[%c0_11, %c0_12] : memref<8x24xbf16, #tpu.memory_space<vmem>>, vector<8x24xbf16>
    %cst_13 = arith.constant dense<0.000000e+00> : vector<512x24xf32>
    %16 = tpu.matmul %14, %15, %cst_13 {dimension_numbers = #tpu.dot_dimension_numbers<[1], [0], [0], [1], [0, 0, 1, 1], [], []>} : vector<512x8xbf16>, vector<8x24xbf16>, vector<512x24xf32> -> vector<512x24xf32>
    %c0_14 = arith.constant 0 : index
    %c0_15 = arith.constant 0 : index
    %17 = vector.load %arg7[%c0_14, %c0_15] : memref<1x24xf32, #tpu.memory_space<vmem>>, vector<1x24xf32>
    %18 = vector.broadcast %17 : vector<1x24xf32> to vector<512x24xf32>
    %19 = arith.addf %16, %18 : vector<512x24xf32>
    %20 = vector.shape_cast %19 : vector<512x24xf32> to vector<4x128x24xf32>
    %21 = vector.extract_strided_slice %20 {offsets = [0, 0, 0], sizes = [4, 128, 8], strides = [1, 1, 1]} : vector<4x128x24xf32> to vector<4x128x8xf32>
    %22 = vector.extract_strided_slice %20 {offsets = [0, 0, 8], sizes = [4, 128, 16], strides = [1, 1, 1]} : vector<4x128x24xf32> to vector<4x128x16xf32>
    %23 = vector.shape_cast %8 : vector<128x16xf32> to vector<1x128x16xf32>
    %24 = vector.broadcast %23 : vector<1x128x16xf32> to vector<4x128x16xf32>
    %25 = arith.addf %24, %22 : vector<4x128x16xf32>
    %cst_16 = arith.constant 0.000000e+00 : f32
    %26 = vector.broadcast %cst_16 : f32 to vector<4x128x16xf32>
    %27 = arith.cmpf oge, %25, %26 : vector<4x128x16xf32>
    %cst_17 = arith.constant 0.00999999977 : f32
    %28 = vector.broadcast %cst_17 : f32 to vector<4x128x16xf32>
    %29 = arith.mulf %28, %25 : vector<4x128x16xf32>
    %30 = arith.select %27, %25, %29 : vector<4x128x16xi1>, vector<4x128x16xf32>
    %31 = vector.shape_cast %30 : vector<4x128x16xf32> to vector<512x16xf32>
    %32 = arith.truncf %31 : vector<512x16xf32> to vector<512x16xbf16>
    %c0_18 = arith.constant 0 : index
    %c0_19 = arith.constant 0 : index
    %33 = vector.load %arg8[%c0_18, %c0_19] : memref<16x8xbf16, #tpu.memory_space<vmem>>, vector<16x8xbf16>
    %cst_20 = arith.constant dense<0.000000e+00> : vector<512x8xf32>
    %34 = tpu.matmul %32, %33, %cst_20 {dimension_numbers = #tpu.dot_dimension_numbers<[1], [0], [0], [1], [0, 0, 1, 1], [], []>} : vector<512x16xbf16>, vector<16x8xbf16>, vector<512x8xf32> -> vector<512x8xf32>
    %c0_21 = arith.constant 0 : index
    %c0_22 = arith.constant 0 : index
    %35 = vector.load %arg9[%c0_21, %c0_22] : memref<1x8xf32, #tpu.memory_space<vmem>>, vector<1x8xf32>
    %36 = vector.broadcast %35 : vector<1x8xf32> to vector<512x8xf32>
    %37 = arith.addf %34, %36 : vector<512x8xf32>
    %38 = vector.shape_cast %37 : vector<512x8xf32> to vector<4x128x8xf32>
    %39 = vector.shape_cast %7 : vector<128x8xf32> to vector<1x128x8xf32>
    %40 = vector.broadcast %39 : vector<1x128x8xf32> to vector<4x128x8xf32>
    %41 = arith.subf %21, %40 : vector<4x128x8xf32>
    %42 = arith.mulf %41, %38 : vector<4x128x8xf32>
    %43 = vector.shape_cast %42 : vector<4x128x8xf32> to vector<512x8xf32>
    %44 = arith.truncf %43 : vector<512x8xf32> to vector<512x8xbf16>
    %c0_23 = arith.constant 0 : index
    %c0_24 = arith.constant 0 : index
    %45 = vector.load %arg10[%c0_23, %c0_24] : memref<8x16xbf16, #tpu.memory_space<vmem>>, vector<8x16xbf16>
    %cst_25 = arith.constant dense<0.000000e+00> : vector<512x16xf32>
    %46 = tpu.matmul %44, %45, %cst_25 {dimension_numbers = #tpu.dot_dimension_numbers<[1], [0], [0], [1], [0, 0, 1, 1], [], []>} : vector<512x8xbf16>, vector<8x16xbf16>, vector<512x16xf32> -> vector<512x16xf32>
    %c0_26 = arith.constant 0 : index
    %c0_27 = arith.constant 0 : index
    %47 = vector.load %arg11[%c0_26, %c0_27] : memref<1x16xf32, #tpu.memory_space<vmem>>, vector<1x16xf32>
    %48 = vector.broadcast %47 : vector<1x16xf32> to vector<512x16xf32>
    %49 = arith.addf %46, %48 : vector<512x16xf32>
    %cst_28 = arith.constant 0.000000e+00 : f32
    %50 = vector.broadcast %cst_28 : f32 to vector<512x16xf32>
    %51 = arith.maximumf %49, %50 : vector<512x16xf32>
    %52 = vector.shape_cast %51 : vector<512x16xf32> to vector<4x128x16xf32>
    %cst_29 = arith.constant dense<0xFF800000> : vector<128x16xf32>
    %53 = vector.multi_reduction <maximumf>, %52, %cst_29 [0] : vector<4x128x16xf32> to vector<128x16xf32>
    %54 = arith.addf %11, %53 : vector<128x16xf32>
    %55 = tpu.transpose %54, [1, 0] : vector<128x16xf32> -> vector<16x128xf32>
    %c0_30 = arith.constant 0 : index
    %c0_31 = arith.constant 0 : index
    %c0_32 = arith.constant 0 : index
    %56 = vector.load %arg12[%c0_30, %c0_31, %c0_32] : memref<1x16x128xf32, #tpu.memory_space<vmem>>, vector<1x16x128xf32>
    %57 = vector.shape_cast %56 : vector<1x16x128xf32> to vector<16x128xf32>
    %58 = vector.shape_cast %55 : vector<16x128xf32> to vector<1x16x128xf32>
    tpu.vector_store %arg12[%c0_30, %c0_31, %c0_32], %58 {strides = array<i32>} : memref<1x16x128xf32, #tpu.memory_space<vmem>>, vector<1x16x128xf32>,
    return
  }
  func.func @transform_0(%arg0: i32, %arg1: i32) -> (i32, i32, i32) {
    %c0_i32 = arith.constant 0 : i32
    %c0_i32_0 = arith.constant 0 : i32
    return %arg0, %arg1, %c0_i32 : i32, i32, i32
  }
  func.func @transform_1(%arg0: i32, %arg1: i32) -> (i32, i32, i32, i32) {
    %c0_i32 = arith.constant 0 : i32
    %c0_i32_0 = arith.constant 0 : i32
    %c0_i32_1 = arith.constant 0 : i32
    return %arg0, %c0_i32, %arg1, %c0_i32_0 : i32, i32, i32, i32
  }
  func.func @transform_2(%arg0: i32, %arg1: i32) -> (i32, i32) {
    %c0_i32 = arith.constant 0 : i32
    %c0_i32_0 = arith.constant 0 : i32
    %c0_i32_1 = arith.constant 0 : i32
    return %c0_i32, %c0_i32_0 : i32, i32
  }
  func.func @transform_3(%arg0: i32, %arg1: i32) -> (i32, i32) {
    %c0_i32 = arith.constant 0 : i32
    %c0_i32_0 = arith.constant 0 : i32
    %c0_i32_1 = arith.constant 0 : i32
    return %c0_i32, %c0_i32_0 : i32, i32
  }
  func.func @transform_4(%arg0: i32, %arg1: i32) -> (i32, i32) {
    %c0_i32 = arith.constant 0 : i32
    %c0_i32_0 = arith.constant 0 : i32
    %c0_i32_1 = arith.constant 0 : i32
    return %c0_i32, %c0_i32_0 : i32, i32
  }
  func.func @transform_5(%arg0: i32, %arg1: i32) -> (i32, i32) {
    %c0_i32 = arith.constant 0 : i32
    %c0_i32_0 = arith.constant 0 : i32
    %c0_i32_1 = arith.constant 0 : i32
    return %c0_i32, %c0_i32_0 : i32, i32
  }
  func.func @transform_6(%arg0: i32, %arg1: i32) -> (i32, i32) {
    %c0_i32 = arith.constant 0 : i32
    %c0_i32_0 = arith.constant 0 : i32
    %c0_i32_1 = arith.constant 0 : i32
    return %c0_i32, %c0_i32_0 : i32, i32
  }
  func.func @transform_7(%arg0: i32, %arg1: i32) -> (i32, i32) {
    %c0_i32 = arith.constant 0 : i32
    %c0_i32_0 = arith.constant 0 : i32
    %c0_i32_1 = arith.constant 0 : i32
    return %c0_i32, %c0_i32_0 : i32, i32
  }
  func.func @transform_8(%arg0: i32, %arg1: i32) -> (i32, i32) {
    %c0_i32 = arith.constant 0 : i32
    %c0_i32_0 = arith.constant 0 : i32
    %c0_i32_1 = arith.constant 0 : i32
    return %c0_i32, %c0_i32_0 : i32, i32
  }
  func.func @transform_9(%arg0: i32, %arg1: i32) -> (i32, i32) {
    %c0_i32 = arith.constant 0 : i32
    %c0_i32_0 = arith.constant 0 : i32
    %c0_i32_1 = arith.constant 0 : i32
    return %c0_i32, %c0_i32_0 : i32, i32
  }
  func.func @transform_10(%arg0: i32, %arg1: i32) -> (i32, i32, i32) {
    %c0_i32 = arith.constant 0 : i32
    %c0_i32_0 = arith.constant 0 : i32
    return %arg0, %c0_i32, %arg1 : i32, i32, i32
  }
}

</mosaic_0001>

<llo_original>
// kernel: tpu_custom_call.1
$region0: #{tpu_custom_call.1}
  #allocation0 [shape = 'u32[]', space=smem, size = 0x4, offset = 0x4, fixed_abs, tag = 'smem constant byte address 0x4 - core index']
  #allocation1 [shape = 'u32[144,128]{1,0:T(1,128)}', space=vmem, size = 0x12000, scoped, tag = 'internal scratch']
  %s0 = inlined_call_operand.vmem [shape: bf16[2,128,8], index: 0, kind: input, shape index: {}]
  %s1 = inlined_call_operand.vmem [shape: bf16[2,4,128,8], index: 1, kind: input, shape index: {}]
  %s2 = inlined_call_operand.vmem [shape: bf16[8,40], index: 2, kind: input, shape index: {}]
  %s3 = inlined_call_operand.vmem [shape: f32[1,40], index: 3, kind: input, shape index: {}]
  %s4 = inlined_call_operand.vmem [shape: bf16[8,24], index: 4, kind: input, shape index: {}]
  %s5 = inlined_call_operand.vmem [shape: f32[1,24], index: 5, kind: input, shape index: {}]
  %s6 = inlined_call_operand.vmem [shape: bf16[16,8], index: 6, kind: input, shape index: {}]
  %s7 = inlined_call_operand.vmem [shape: f32[1,8], index: 7, kind: input, shape index: {}]
  %s8 = inlined_call_operand.vmem [shape: bf16[8,16], index: 8, kind: input, shape index: {}]
  %s9 = inlined_call_operand.vmem [shape: f32[1,16], index: 9, kind: input, shape index: {}]
  %s10 = inlined_call_operand.hbm [shape: f32[2,16,128], index: 10, kind: output, shape index: {}]
  %s11 = sld [smem:[#allocation0]]
  $region73: #{tpu_custom_call.1} parent=0
    _
  %s13 = ssub.s32 1, %s11
  %s14 = scalar_select 0, %s13, %s11
  $region1: #{tpu_custom_call.1} parent=0
    #allocation2 [shape = 'u8[16384]{0}', space=vmem, size = 0x4000, scoped, tag = 'output window, operand 0']
    #allocation3 [shape = 's32[2]{0}', space=sflag, size = 0x8, scoped, tag = 'scoped memory for tpu_custom_call.1']
    %15 = vsyncpa [#allocation3], 0
    %s16 = scalar_lea.sflag [#allocation3], 1
    %17 = vsyncpa %s16, 0
    loop: start=0, step=1, limit=4
    $region2: #{tpu_custom_call.1} parent=1 // loop_pre_header
      _
    $region3: #{tpu_custom_call.1} parent=1 // loop_header
      %s19 = sphi 0, %s23
      %p20 = scmp.ge.s32.totalorder %s19, 4
      %s26 = sphi 0, %s38
      %s27 = sphi 0, %s34
      %s28 = sphi 0, %s26
      %s29 = sphi 0, %s27
      %s30 = sphi 0, %s28
      %s31 = sphi 0, %s29
      %s43 = sphi 0, %s45
      %s46 = sphi 0, %s43
      %s47 = sphi 0, %s46
      %s63 = sphi 0, %s47
      %s71 = sphi 0, %s73
      %s74 = sphi 0, %s71
      %s75 = sphi 0, %s74
      %s91 = sphi 0, %s75
      %s95 = sphi 0, %s95
      %s97 = sphi 0, %s95
      %s98 = sphi 0, %s97
      %s112 = sphi 0, %s98
      %s116 = sphi 0, %s116
      %s118 = sphi 0, %s116
      %s119 = sphi 0, %s118
      %s133 = sphi 0, %s119
      %s137 = sphi 0, %s137
      %s139 = sphi 0, %s137
      %s140 = sphi 0, %s139
      %s154 = sphi 0, %s140
      %s158 = sphi 0, %s158
      %s160 = sphi 0, %s158
      %s161 = sphi 0, %s160
      %s175 = sphi 0, %s161
      %s179 = sphi 0, %s179
      %s181 = sphi 0, %s179
      %s182 = sphi 0, %s181
      %s196 = sphi 0, %s182
      %s200 = sphi 0, %s200
      %s202 = sphi 0, %s200
      %s203 = sphi 0, %s202
      %s217 = sphi 0, %s203
      %s221 = sphi 0, %s221
      %s223 = sphi 0, %s221
      %s224 = sphi 0, %s223
      %s238 = sphi 0, %s224
      %s242 = sphi 0, %s242
      %s244 = sphi 0, %s242
      %s245 = sphi 0, %s244
      %s259 = sphi 0, %s245
      %s267 = sphi 0, %s269
      %s270 = sphi 0, %s267
      %s271 = sphi 0, %s270
      %s287 = sphi 0, %s271
    $region4: #{tpu_custom_call.1} parent=1 // loop_header_branch
      %22 = sbr.rel (%p20) target = $region8
    $region5: #{tpu_custom_call.1} parent=1 // loop_body
      %s24 = ssub.s32 %s19, 1
      %s25 = ssub.s32 %s19, 2
      %s32 = sadd.s32 1, %s27
      %p33 = scmp.ge.s32.totalorder %s32, 1
      %s34 = scalar_select %p33, 0, %s32
      %s35 = sadd.s32 1, %s26
      %s36 = scalar_select %p33, %s35, %s26
      %p37 = scmp.ge.s32.totalorder %s36, 2
      %s38 = scalar_select %p37, 0, %s36
      %s39 = ssub.s32 %s26, %s38
      %s40 = ssub.s32 %s27, %s34
      %s41 = sor.u32 %s39, %s40
      %p42 = scmp.eq.s32.totalorder %s41, 0
      %s44 = sadd.s32 %s43, 1
      %s45 = scalar_select %p42, %s43, %s44
      %p48 = pneg %p42
      %p49 = scmp.eq.s32.totalorder %s19, 1
      %p50 = por %p48, %p49
      %p51 = scmp.ne.s32.totalorder %s43, %s46
      %p52 = scmp.eq.s32.totalorder %s19, 0
      %p53 = por %p51, %p52
      %p54 = scmp.ne.s32.totalorder %s43, %s46
      %p55 = scmp.eq.s32.totalorder %s24, 1
      %p56 = por %p54, %p55
      %p57 = scmp.ne.s32.totalorder %s46, %s47
      %p58 = scmp.eq.s32.totalorder %s24, 0
      %p59 = por %p57, %p58
      %p60 = scmp.ne.s32.totalorder %s46, %s47
      %p61 = scmp.eq.s32.totalorder %s25, 1
      %p62 = por %p60, %p61
      %p64 = scmp.ne.s32.totalorder %s47, %s63
      %p65 = scmp.eq.s32.totalorder %s25, 0
      %p66 = por %p64, %p65
      %s67 = ssub.s32 %s26, %s38
      %s68 = ssub.s32 %s27, %s34
      %s69 = sor.u32 %s67, %s68
      %p70 = scmp.eq.s32.totalorder %s69, 0
      %s72 = sadd.s32 %s71, 1
      %s73 = scalar_select %p70, %s71, %s72
      %p76 = pneg %p70
      %p77 = scmp.eq.s32.totalorder %s19, 1
      %p78 = por %p76, %p77
      %p79 = scmp.ne.s32.totalorder %s71, %s74
      %p80 = scmp.eq.s32.totalorder %s19, 0
      %p81 = por %p79, %p80
      %p82 = scmp.ne.s32.totalorder %s71, %s74
      %p83 = scmp.eq.s32.totalorder %s24, 1
      %p84 = por %p82, %p83
      %p85 = scmp.ne.s32.totalorder %s74, %s75
      %p86 = scmp.eq.s32.totalorder %s24, 0
      %p87 = por %p85, %p86
      %p88 = scmp.ne.s32.totalorder %s74, %s75
      %p89 = scmp.eq.s32.totalorder %s25, 1
      %p90 = por %p88, %p89
      %p92 = scmp.ne.s32.totalorder %s75, %s91
      %p93 = scmp.eq.s32.totalorder %s25, 0
      %p94 = por %p92, %p93
      %s96 = sadd.s32 %s95, 1
      %p99 = scmp.eq.s32.totalorder %s19, 1
      %p100 = scmp.ne.s32.totalorder %s95, %s97
      %p101 = scmp.eq.s32.totalorder %s19, 0
      %p102 = por %p100, %p101
      %p103 = scmp.ne.s32.totalorder %s95, %s97
      %p104 = scmp.eq.s32.totalorder %s24, 1
      %p105 = por %p103, %p104
      %p106 = scmp.ne.s32.totalorder %s97, %s98
      %p107 = scmp.eq.s32.totalorder %s24, 0
      %p108 = por %p106, %p107
      %p109 = scmp.ne.s32.totalorder %s97, %s98
      %p110 = scmp.eq.s32.totalorder %s25, 1
      %p111 = por %p109, %p110
      %p113 = scmp.ne.s32.totalorder %s98, %s112
      %p114 = scmp.eq.s32.totalorder %s25, 0
      %p115 = por %p113, %p114
      %s117 = sadd.s32 %s116, 1
      %p120 = scmp.eq.s32.totalorder %s19, 1
      %p121 = scmp.ne.s32.totalorder %s116, %s118
      %p122 = scmp.eq.s32.totalorder %s19, 0
      %p123 = por %p121, %p122
      %p124 = scmp.ne.s32.totalorder %s116, %s118
      %p125 = scmp.eq.s32.totalorder %s24, 1
      %p126 = por %p124, %p125
      %p127 = scmp.ne.s32.totalorder %s118, %s119
      %p128 = scmp.eq.s32.totalorder %s24, 0
      %p129 = por %p127, %p128
      %p130 = scmp.ne.s32.totalorder %s118, %s119
      %p131 = scmp.eq.s32.totalorder %s25, 1
      %p132 = por %p130, %p131
      %p134 = scmp.ne.s32.totalorder %s119, %s133
      %p135 = scmp.eq.s32.totalorder %s25, 0
      %p136 = por %p134, %p135
      %s138 = sadd.s32 %s137, 1
      %p141 = scmp.eq.s32.totalorder %s19, 1
      %p142 = scmp.ne.s32.totalorder %s137, %s139
      %p143 = scmp.eq.s32.totalorder %s19, 0
      %p144 = por %p142, %p143
      %p145 = scmp.ne.s32.totalorder %s137, %s139
      %p146 = scmp.eq.s32.totalorder %s24, 1
      %p147 = por %p145, %p146
      %p148 = scmp.ne.s32.totalorder %s139, %s140
      %p149 = scmp.eq.s32.totalorder %s24, 0
      %p150 = por %p148, %p149
      %p151 = scmp.ne.s32.totalorder %s139, %s140
      %p152 = scmp.eq.s32.totalorder %s25, 1
      %p153 = por %p151, %p152
      %p155 = scmp.ne.s32.totalorder %s140, %s154
      %p156 = scmp.eq.s32.totalorder %s25, 0
      %p157 = por %p155, %p156
      %s159 = sadd.s32 %s158, 1
      %p162 = scmp.eq.s32.totalorder %s19, 1
      %p163 = scmp.ne.s32.totalorder %s158, %s160
      %p164 = scmp.eq.s32.totalorder %s19, 0
      %p165 = por %p163, %p164
      %p166 = scmp.ne.s32.totalorder %s158, %s160
      %p167 = scmp.eq.s32.totalorder %s24, 1
      %p168 = por %p166, %p167
      %p169 = scmp.ne.s32.totalorder %s160, %s161
      %p170 = scmp.eq.s32.totalorder %s24, 0
      %p171 = por %p169, %p170
      %p172 = scmp.ne.s32.totalorder %s160, %s161
      %p173 = scmp.eq.s32.totalorder %s25, 1
      %p174 = por %p172, %p173
      %p176 = scmp.ne.s32.totalorder %s161, %s175
      %p177 = scmp.eq.s32.totalorder %s25, 0
      %p178 = por %p176, %p177
      %s180 = sadd.s32 %s179, 1
      %p183 = scmp.eq.s32.totalorder %s19, 1
      %p184 = scmp.ne.s32.totalorder %s179, %s181
      %p185 = scmp.eq.s32.totalorder %s19, 0
      %p186 = por %p184, %p185
      %p187 = scmp.ne.s32.totalorder %s179, %s181
      %p188 = scmp.eq.s32.totalorder %s24, 1
      %p189 = por %p187, %p188
      %p190 = scmp.ne.s32.totalorder %s181, %s182
      %p191 = scmp.eq.s32.totalorder %s24, 0
      %p192 = por %p190, %p191
      %p193 = scmp.ne.s32.totalorder %s181, %s182
      %p194 = scmp.eq.s32.totalorder %s25, 1
      %p195 = por %p193, %p194
      %p197 = scmp.ne.s32.totalorder %s182, %s196
      %p198 = scmp.eq.s32.totalorder %s25, 0
      %p199 = por %p197, %p198
      %s201 = sadd.s32 %s200, 1
      %p204 = scmp.eq.s32.totalorder %s19, 1
      %p205 = scmp.ne.s32.totalorder %s200, %s202
      %p206 = scmp.eq.s32.totalorder %s19, 0
      %p207 = por %p205, %p206
      %p208 = scmp.ne.s32.totalorder %s200, %s202
      %p209 = scmp.eq.s32.totalorder %s24, 1
      %p210 = por %p208, %p209
      %p211 = scmp.ne.s32.totalorder %s202, %s203
      %p212 = scmp.eq.s32.totalorder %s24, 0
      %p213 = por %p211, %p212
      %p214 = scmp.ne.s32.totalorder %s202, %s203
      %p215 = scmp.eq.s32.totalorder %s25, 1
      %p216 = por %p214, %p215
      %p218 = scmp.ne.s32.totalorder %s203, %s217
      %p219 = scmp.eq.s32.totalorder %s25, 0
      %p220 = por %p218, %p219
      %s222 = sadd.s32 %s221, 1
      %p225 = scmp.eq.s32.totalorder %s19, 1
      %p226 = scmp.ne.s32.totalorder %s221, %s223
      %p227 = scmp.eq.s32.totalorder %s19, 0
      %p228 = por %p226, %p227
      %p229 = scmp.ne.s32.totalorder %s221, %s223
      %p230 = scmp.eq.s32.totalorder %s24, 1
      %p231 = por %p229, %p230
      %p232 = scmp.ne.s32.totalorder %s223, %s224
      %p233 = scmp.eq.s32.totalorder %s24, 0
      %p234 = por %p232, %p233
      %p235 = scmp.ne.s32.totalorder %s223, %s224
      %p236 = scmp.eq.s32.totalorder %s25, 1
      %p237 = por %p235, %p236
      %p239 = scmp.ne.s32.totalorder %s224, %s238
      %p240 = scmp.eq.s32.totalorder %s25, 0
      %p241 = por %p239, %p240
      %s243 = sadd.s32 %s242, 1
      %p246 = scmp.eq.s32.totalorder %s19, 1
      %p247 = scmp.ne.s32.totalorder %s242, %s244
      %p248 = scmp.eq.s32.totalorder %s19, 0
      %p249 = por %p247, %p248
      %p250 = scmp.ne.s32.totalorder %s242, %s244
      %p251 = scmp.eq.s32.totalorder %s24, 1
      %p252 = por %p250, %p251
      %p253 = scmp.ne.s32.totalorder %s244, %s245
      %p254 = scmp.eq.s32.totalorder %s24, 0
      %p255 = por %p253, %p254
      %p256 = scmp.ne.s32.totalorder %s244, %s245
      %p257 = scmp.eq.s32.totalorder %s25, 1
      %p258 = por %p256, %p257
      %p260 = scmp.ne.s32.totalorder %s245, %s259
      %p261 = scmp.eq.s32.totalorder %s25, 0
      %p262 = por %p260, %p261
      %s263 = ssub.s32 %s26, %s38
      %s264 = ssub.s32 %s27, %s34
      %s265 = sor.u32 %s263, %s264
      %p266 = scmp.eq.s32.totalorder %s265, 0
      %s268 = sadd.s32 %s267, 1
      %s269 = scalar_select %p266, %s267, %s268
      %p272 = pneg %p266
      %p273 = scmp.eq.s32.totalorder %s19, 1
      %p274 = por %p272, %p273
      %p275 = scmp.ne.s32.totalorder %s267, %s270
      %p276 = scmp.eq.s32.totalorder %s19, 0
      %p277 = por %p275, %p276
      %p278 = scmp.ne.s32.totalorder %s267, %s270
      %p279 = scmp.eq.s32.totalorder %s24, 1
      %p280 = por %p278, %p279
      %p281 = scmp.ne.s32.totalorder %s270, %s271
      %p282 = scmp.eq.s32.totalorder %s24, 0
      %p283 = por %p281, %p282
      %p284 = scmp.ne.s32.totalorder %s270, %s271
      %p285 = scmp.eq.s32.totalorder %s25, 1
      %p286 = por %p284, %p285
      %p288 = scmp.ne.s32.totalorder %s271, %s287
      %p289 = scmp.eq.s32.totalorder %s25, 0
      %p290 = por %p288, %p289
      %p291 = scmp.le.s32.totalorder 1, %s19
      %p292 = scmp.lt.s32.totalorder %s19, 3
      %p293 = pnand %p291, %p292
      %p294 = pneg %p293
      // Predicated region
      $region9: #{tpu_custom_call.1} parent=5 // pred_check
        _
      $region10: #{tpu_custom_call.1} parent=5 // pred_check_branch
        %296 = sbr.rel (%p293) target = $region12
      $region11: #{tpu_custom_call.1} parent=5 // pred_region
        %s297 = ssub.s32 %s19, 1
        // Predicated region
        $region13: #{tpu_custom_call.1} parent=11 // pred_check
          %p298 = pneg %p108
        $region14: #{tpu_custom_call.1} parent=11 // pred_check_branch
          %300 = sbr.rel (%p298) target = $region16
        $region15: #{tpu_custom_call.1} parent=11 // pred_region
          _
        $region16: #{tpu_custom_call.1} parent=11 // pred_fallthru
          _
        // Predicated region
        $region17: #{tpu_custom_call.1} parent=11 // pred_check
          %p301 = pneg %p129
        $region18: #{tpu_custom_call.1} parent=11 // pred_check_branch
          %303 = sbr.rel (%p301) target = $region20
        $region19: #{tpu_custom_call.1} parent=11 // pred_region
          _
        $region20: #{tpu_custom_call.1} parent=11 // pred_fallthru
          _
        // Predicated region
        $region21: #{tpu_custom_call.1} parent=11 // pred_check
          %p304 = pneg %p150
        $region22: #{tpu_custom_call.1} parent=11 // pred_check_branch
          %306 = sbr.rel (%p304) target = $region24
        $region23: #{tpu_custom_call.1} parent=11 // pred_region
          _
        $region24: #{tpu_custom_call.1} parent=11 // pred_fallthru
          _
        // Predicated region
        $region25: #{tpu_custom_call.1} parent=11 // pred_check
          %p307 = pneg %p171
        $region26: #{tpu_custom_call.1} parent=11 // pred_check_branch
          %309 = sbr.rel (%p307) target = $region28
        $region27: #{tpu_custom_call.1} parent=11 // pred_region
          _
        $region28: #{tpu_custom_call.1} parent=11 // pred_fallthru
          _
        // Predicated region
        $region29: #{tpu_custom_call.1} parent=11 // pred_check
          %p310 = pneg %p192
        $region30: #{tpu_custom_call.1} parent=11 // pred_check_branch
          %312 = sbr.rel (%p310) target = $region32
        $region31: #{tpu_custom_call.1} parent=11 // pred_region
          _
        $region32: #{tpu_custom_call.1} parent=11 // pred_fallthru
          _
        // Predicated region
        $region33: #{tpu_custom_call.1} parent=11 // pred_check
          %p313 = pneg %p213
        $region34: #{tpu_custom_call.1} parent=11 // pred_check_branch
          %315 = sbr.rel (%p313) target = $region36
        $region35: #{tpu_custom_call.1} parent=11 // pred_region
          _
        $region36: #{tpu_custom_call.1} parent=11 // pred_fallthru
          _
        // Predicated region
        $region37: #{tpu_custom_call.1} parent=11 // pred_check
          %p316 = pneg %p234
        $region38: #{tpu_custom_call.1} parent=11 // pred_check_branch
          %318 = sbr.rel (%p316) target = $region40
        $region39: #{tpu_custom_call.1} parent=11 // pred_region
          _
        $region40: #{tpu_custom_call.1} parent=11 // pred_fallthru
          _
        // Predicated region
        $region41: #{tpu_custom_call.1} parent=11 // pred_check
          %p319 = pneg %p255
        $region42: #{tpu_custom_call.1} parent=11 // pred_check_branch
          %321 = sbr.rel (%p319) target = $region44
        $region43: #{tpu_custom_call.1} parent=11 // pred_region
          _
        $region44: #{tpu_custom_call.1} parent=11 // pred_fallthru
          _
      $region12: #{tpu_custom_call.1} parent=5 // pred_fallthru
        _
      %p322 = scmp.lt.s32.totalorder %s19, 2
      // Predicated region
      $region45: #{tpu_custom_call.1} parent=5 // pred_check
        %p323 = pneg %p322
      $region46: #{tpu_custom_call.1} parent=5 // pred_check_branch
        %325 = sbr.rel (%p323) target = $region48
      $region47: #{tpu_custom_call.1} parent=5 // pred_region
        // Predicated region
        $region49: #{tpu_custom_call.1} parent=47 // pred_check
          %p326 = pneg %p53
        $region50: #{tpu_custom_call.1} parent=47 // pred_check_branch
          %328 = sbr.rel (%p326) target = $region52
        $region51: #{tpu_custom_call.1} parent=47 // pred_region
          %s329 = smul.u32 16, %s27
          %p330 = scmp.lt.s32.totalorder %s26, 1
          %s331 = scalar_select %p330, %s26, 1
          %p332 = scmp.lt.s32.totalorder %s329, 15
          %s333 = scalar_select %p332, %s329, 15
          %s334 = smul.addr %s331, 16
          %s335 = sadd.s32 %s333, %s334
          %s336 = smul.addr %s335, 4
          %s337 = scalar_lea.vmem %s0, %s336
          %s338 = smul.u32 16, %s27
        $region52: #{tpu_custom_call.1} parent=47 // pred_fallthru
          _
        // Predicated region
        $region53: #{tpu_custom_call.1} parent=47 // pred_check
          %p339 = pneg %p81
        $region54: #{tpu_custom_call.1} parent=47 // pred_check_branch
          %341 = sbr.rel (%p339) target = $region56
        $region55: #{tpu_custom_call.1} parent=47 // pred_region
          %s342 = smul.u32 16, %s27
          %p343 = scmp.lt.s32.totalorder %s26, 1
          %s344 = scalar_select %p343, %s26, 1
          %p345 = scmp.lt.s32.totalorder %s342, 15
          %s346 = scalar_select %p345, %s342, 15
          %s347 = smul.addr %s344, 64
          %s348 = sadd.s32 %s346, %s347
          %s349 = smul.addr %s348, 4
          %s350 = scalar_lea.vmem %s1, %s349
          %s351 = smul.u32 16, %s27
        $region56: #{tpu_custom_call.1} parent=47 // pred_fallthru
          _
      $region48: #{tpu_custom_call.1} parent=5 // pred_fallthru
        _
      %p352 = scmp.le.s32.totalorder 1, %s19
      %p353 = scmp.lt.s32.totalorder %s19, 3
      %p354 = pnand %p352, %p353
      %p355 = pneg %p354
      // Predicated region
      $region57: #{tpu_custom_call.1} parent=5 // pred_check
        _
      $region58: #{tpu_custom_call.1} parent=5 // pred_check_branch
        %357 = sbr.rel (%p354) target = $region60
      $region59: #{tpu_custom_call.1} parent=5 // pred_region
        %s358 = ssub.s32 %s19, 1
        %s359 = smul.u32 16, %s29
        %p360 = scmp.lt.s32.totalorder %s28, 1
        %s361 = scalar_select %p360, %s28, 1
        %p362 = scmp.lt.s32.totalorder %s359, 15
        %s363 = scalar_select %p362, %s359, 15
        %s364 = smul.addr %s361, 16
        %s365 = sadd.s32 %s363, %s364
        %s366 = smul.addr %s365, 4
        %s367 = scalar_lea.vmem %s0, %s366
        %p368 = pneg %p59
        %p369 = pneg %p56
        %s370 = smul.u32 16, %s29
        %p371 = scmp.lt.s32.totalorder %s28, 1
        %s372 = scalar_select %p371, %s28, 1
        %p373 = scmp.lt.s32.totalorder %s370, 15
        %s374 = scalar_select %p373, %s370, 15
        %s375 = smul.addr %s372, 64
        %s376 = sadd.s32 %s374, %s375
        %s377 = smul.addr %s376, 4
        %s378 = scalar_lea.vmem %s1, %s377
        %p379 = pneg %p87
        %p380 = pneg %p84
        %p381 = pneg %p108
        %p382 = pneg %p105
        %p383 = pneg %p129
        %p384 = pneg %p126
        %p385 = pneg %p150
        %p386 = pneg %p147
        %p387 = pneg %p171
        %p388 = pneg %p168
        %p389 = pneg %p192
        %p390 = pneg %p189
        %p391 = pneg %p213
        %p392 = pneg %p210
        %p393 = pneg %p234
        %p394 = pneg %p231
        %p395 = pneg %p255
        %p396 = pneg %p252
        %p397 = pneg %p283
        %p398 = pneg %p280
        %s399 = sand.u32 %s270, 1
        %s400 = scalar_lea.sflag [#allocation3], %s399
        %s401 = sand.u32 %s270, 1
        %s402 = smul.addr %s401, 16
        %s403 = scalar_lea.vmem [#allocation2], %s402
        %s404 = smul.u32 16, %s29
        %p405 = scmp.lt.s32.totalorder %s28, 1
        %s406 = scalar_select %p405, %s28, 1
        %p407 = scmp.lt.s32.totalorder %s404, 15
        %s408 = scalar_select %p407, %s404, 15
        %s409 = smul.addr %s406, 16
        %s410 = sadd.s32 %s408, %s409
        %s411 = smul.addr %s410, 4
        %s412 = scalar_lea.vmem %s0, %s411
        %s413 = smul.u32 16, %s29
        %s414 = smul.u32 16, %s29
        %p415 = scmp.lt.s32.totalorder %s28, 1
        %s416 = scalar_select %p415, %s28, 1
        %p417 = scmp.lt.s32.totalorder %s414, 15
        %s418 = scalar_select %p417, %s414, 15
        %s419 = smul.addr %s416, 64
        %s420 = sadd.s32 %s418, %s419
        %s421 = smul.addr %s420, 4
        %s422 = scalar_lea.vmem %s1, %s421
        %s423 = smul.u32 16, %s29
        %v425 = vld [vmem:[%s412] sm:$0xf]
        %v426 = vld [vmem:[%s412 + $0x4] sm:$0xf]
        %v427 = vld [vmem:[%s412 + $0x8] sm:$0xf]
        %v428 = vld [vmem:[%s412 + $0xc] sm:$0xf]
        %v429 = vld [vmem:[%s412 + $0x10] sm:$0xf]
        %v430 = vld [vmem:[%s412 + $0x14] sm:$0xf]
        %v431 = vld [vmem:[%s412 + $0x18] sm:$0xf]
        %v432 = vld [vmem:[%s412 + $0x1c] sm:$0xf]
        %v433 = vld [vmem:[%s412 + $0x20] sm:$0xf]
        %v434 = vld [vmem:[%s412 + $0x24] sm:$0xf]
        %v435 = vld [vmem:[%s412 + $0x28] sm:$0xf]
        %v436 = vld [vmem:[%s412 + $0x2c] sm:$0xf]
        %v437 = vld [vmem:[%s412 + $0x30] sm:$0xf]
        %v438 = vld [vmem:[%s412 + $0x34] sm:$0xf]
        %v439 = vld [vmem:[%s412 + $0x38] sm:$0xf]
        %v440 = vld [vmem:[%s412 + $0x3c] sm:$0xf]
        %v441 = vld [vmem:[%s2] sm:$0xf]
        %v442 = vld [vmem:[%s3] sm:$0x1]
        %v444 = vlaneseq
        %v445 = vshrl.u32 %v444, 7
        %v446 = vsub.s32 0, %v445
        %v447 = vrot.slane %v442, %v446
        %v465 = vunpack.c.l.b16 %v425
        %v466 = vunpack.c.l.b16 %v426
        %v467 = vunpack.c.l.b16 %v427
        %v468 = vunpack.c.l.b16 %v428
        %v469 = vunpack.c.l.b16 %v429
        %v470 = vunpack.c.l.b16 %v430
        %v471 = vunpack.c.l.b16 %v431
        %v472 = vunpack.c.l.b16 %v432
        %v473 = vunpack.c.l.b16 %v433
        %v474 = vunpack.c.l.b16 %v434
        %v475 = vunpack.c.l.b16 %v435
        %v476 = vunpack.c.l.b16 %v436
        %v477 = vunpack.c.l.b16 %v437
        %v478 = vunpack.c.l.b16 %v438
        %v479 = vunpack.c.l.b16 %v439
        %v480 = vunpack.c.l.b16 %v440
        %v481 = vpack.c.b16 %v466, %v465
        %v482 = vpack.c.b16 %v468, %v467
        %v483 = vpack.c.b16 %v470, %v469
        %v484 = vpack.c.b16 %v472, %v471
        %v485 = vpack.c.b16 %v474, %v473
        %v486 = vpack.c.b16 %v476, %v475
        %v487 = vpack.c.b16 %v478, %v477
        %v488 = vpack.c.b16 %v480, %v479
        %vm489 = vcmask 64512
        %v491 = vsel %vm489, %v481, 0
        %v494 = vsel %vm489, %v482, 0
        %v497 = vsel %vm489, %v483, 0
        %v500 = vsel %vm489, %v484, 0
        %v503 = vsel %vm489, %v485, 0
        %v506 = vsel %vm489, %v486, 0
        %v509 = vsel %vm489, %v487, 0
        %v512 = vsel %vm489, %v488, 0
        %vm514 = vcmask 1043456
        %v516 = vsel %vm514, %v441, 0
        %518 = vmatprep.subr.bf16.mxu0 0
        %519 = vmatpush1.bf16.msra.mxu0 %v516
        %520 = vmatprep.subr.bf16.mxu0 0
        %521 = vmatpush1.bf16.msra.mxu0 0
        %522 = vmatprep.subr.bf16.mxu0 0
        %523 = vmatpush1.bf16.msra.mxu0 0
        %524 = vmatprep.subr.bf16.mxu0 0
        %525 = vmatpush1.bf16.msra.mxu0 0
        %526 = vmatprep.subr.bf16.mxu0 0
        %527 = vmatpush1.bf16.msra.mxu0 0
        %528 = vmatprep.subr.bf16.mxu0 0
        %529 = vmatpush1.bf16.msra.mxu0 0
        %530 = vmatprep.subr.bf16.mxu0 0
        %531 = vmatpush1.bf16.msra.mxu0 0
        %532 = vmatprep.subr.bf16.mxu0 0
        %533 = vmatpush1.bf16.msra.mxu0 0
        %534 = vmatprep.subr.bf16.mxu0 0
        %535 = vmatpush1.bf16.msra.mxu0 0
        %536 = vmatprep.subr.bf16.mxu0 0
        %537 = vmatpush1.bf16.msra.mxu0 0
        %538 = vmatprep.subr.bf16.mxu0 0
        %539 = vmatpush1.bf16.msra.mxu0 0
        %540 = vmatprep.subr.bf16.mxu0 0
        %541 = vmatpush1.bf16.msra.mxu0 0
        %542 = vmatprep.subr.bf16.mxu0 0
        %543 = vmatpush1.bf16.msra.mxu0 0
        %544 = vmatprep.subr.bf16.mxu0 0
        %545 = vmatpush1.bf16.msra.mxu0 0
        %546 = vmatprep.subr.bf16.mxu0 0
        %547 = vmatpush1.bf16.msra.mxu0 0
        %548 = vmatprep.subr.bf16.mxu0 0
        %549 = vmatpush1.bf16.msra.mxu0 0
        %550 = vmatprep.mubr.bf16.mxu0 0
        %551 = vmatmul.mubr.bf16.gmra.mrb[0].mxu0 %v491
        %v552 = vpop.f32.mrb[0].mxu0
        %v553 = vadd.f32 %v447, %v552
        %v554 = vpop.f32.mrb[0].mxu0
        %v555 = vpop.f32.mrb[0].mxu0
        %v556 = vadd.f32 %v447, %v555
        %v557 = vpop.f32.mrb[0].mxu0
        %558 = vmatprep.mubr.bf16.mxu0 0
        %559 = vmatmul.mubr.bf16.gmra.mrb[0].mxu0 %v494
        %v560 = vpop.f32.mrb[0].mxu0
        %v561 = vadd.f32 %v447, %v560
        %v562 = vpop.f32.mrb[0].mxu0
        %v563 = vpop.f32.mrb[0].mxu0
        %v564 = vadd.f32 %v447, %v563
        %v565 = vpop.f32.mrb[0].mxu0
        %566 = vmatprep.mubr.bf16.mxu0 0
        %567 = vmatmul.mubr.bf16.gmra.mrb[0].mxu0 %v497
        %v568 = vpop.f32.mrb[0].mxu0
        %v569 = vadd.f32 %v447, %v568
        %v570 = vpop.f32.mrb[0].mxu0
        %v571 = vpop.f32.mrb[0].mxu0
        %v572 = vadd.f32 %v447, %v571
        %v573 = vpop.f32.mrb[0].mxu0
        %574 = vmatprep.mubr.bf16.mxu0 0
        %575 = vmatmul.mubr.bf16.gmra.mrb[0].mxu0 %v500
        %v576 = vpop.f32.mrb[0].mxu0
        %v577 = vadd.f32 %v447, %v576
        %v578 = vpop.f32.mrb[0].mxu0
        %v579 = vpop.f32.mrb[0].mxu0
        %v580 = vadd.f32 %v447, %v579
        %v581 = vpop.f32.mrb[0].mxu0
        %582 = vmatprep.mubr.bf16.mxu0 0
        %583 = vmatmul.mubr.bf16.gmra.mrb[0].mxu0 %v503
        %v584 = vpop.f32.mrb[0].mxu0
        %v585 = vadd.f32 %v447, %v584
        %v586 = vpop.f32.mrb[0].mxu0
        %v587 = vpop.f32.mrb[0].mxu0
        %v588 = vadd.f32 %v447, %v587
        %v589 = vpop.f32.mrb[0].mxu0
        %590 = vmatprep.mubr.bf16.mxu0 0
        %591 = vmatmul.mubr.bf16.gmra.mrb[0].mxu0 %v506
        %v592 = vpop.f32.mrb[0].mxu0
        %v593 = vadd.f32 %v447, %v592
        %v594 = vpop.f32.mrb[0].mxu0
        %v595 = vpop.f32.mrb[0].mxu0
        %v596 = vadd.f32 %v447, %v595
        %v597 = vpop.f32.mrb[0].mxu0
        %598 = vmatprep.mubr.bf16.mxu0 0
        %599 = vmatmul.mubr.bf16.gmra.mrb[0].mxu0 %v509
        %v600 = vpop.f32.mrb[0].mxu0
        %v601 = vadd.f32 %v447, %v600
        %v602 = vpop.f32.mrb[0].mxu0
        %v603 = vpop.f32.mrb[0].mxu0
        %v604 = vadd.f32 %v447, %v603
        %v605 = vpop.f32.mrb[0].mxu0
        %606 = vmatprep.mubr.bf16.mxu0 0
        %607 = vmatmul.mubr.bf16.gmra.mrb[0].mxu0 %v512
        %v608 = vpop.f32.mrb[0].mxu0
        %v609 = vadd.f32 %v447, %v608
        %v610 = vpop.f32.mrb[0].mxu0
        %v611 = vpop.f32.mrb[0].mxu0
        %v612 = vadd.f32 %v447, %v611
        %v613 = vpop.f32.mrb[0].mxu0
        %614 = vdwg.mxu0
        %v615 = vmax.f32 %v553, 0.0
        %v616 = vmax.f32 %v556, 0.0
        %v617 = vmax.f32 %v561, 0.0
        %v618 = vmax.f32 %v564, 0.0
        %v619 = vmax.f32 %v569, 0.0
        %v620 = vmax.f32 %v572, 0.0
        %v621 = vmax.f32 %v577, 0.0
        %v622 = vmax.f32 %v580, 0.0
        %v623 = vmax.f32 %v585, 0.0
        %v624 = vmax.f32 %v588, 0.0
        %v625 = vmax.f32 %v593, 0.0
        %v626 = vmax.f32 %v596, 0.0
        %v627 = vmax.f32 %v601, 0.0
        %v628 = vmax.f32 %v604, 0.0
        %v629 = vmax.f32 %v609, 0.0
        %v630 = vmax.f32 %v612, 0.0
        %v631 = vld [vmem:[%s422] sm:$0xf]
        %v632 = vld [vmem:[%s422 + $0x4] sm:$0xf]
        %v633 = vld [vmem:[%s422 + $0x8] sm:$0xf]
        %v634 = vld [vmem:[%s422 + $0xc] sm:$0xf]
        %v635 = vld [vmem:[%s422 + $0x10] sm:$0xf]
        %v636 = vld [vmem:[%s422 + $0x14] sm:$0xf]
        %v637 = vld [vmem:[%s422 + $0x18] sm:$0xf]
        %v638 = vld [vmem:[%s422 + $0x1c] sm:$0xf]
        %v639 = vld [vmem:[%s422 + $0x20] sm:$0xf]
        %v640 = vld [vmem:[%s422 + $0x24] sm:$0xf]
        %v641 = vld [vmem:[%s422 + $0x28] sm:$0xf]
        %v642 = vld [vmem:[%s422 + $0x2c] sm:$0xf]
        %v643 = vld [vmem:[%s422 + $0x30] sm:$0xf]
        %v644 = vld [vmem:[%s422 + $0x34] sm:$0xf]
        %v645 = vld [vmem:[%s422 + $0x38] sm:$0xf]
        %v646 = vld [vmem:[%s422 + $0x3c] sm:$0xf]
        %v647 = vld [vmem:[%s422 + $0x40] sm:$0xf]
        %v648 = vld [vmem:[%s422 + $0x44] sm:$0xf]
        %v649 = vld [vmem:[%s422 + $0x48] sm:$0xf]
        %v650 = vld [vmem:[%s422 + $0x4c] sm:$0xf]
        %v651 = vld [vmem:[%s422 + $0x50] sm:$0xf]
        %v652 = vld [vmem:[%s422 + $0x54] sm:$0xf]
        %v653 = vld [vmem:[%s422 + $0x58] sm:$0xf]
        %v654 = vld [vmem:[%s422 + $0x5c] sm:$0xf]
        %v655 = vld [vmem:[%s422 + $0x60] sm:$0xf]
        %v656 = vld [vmem:[%s422 + $0x64] sm:$0xf]
        %v657 = vld [vmem:[%s422 + $0x68] sm:$0xf]
        %v658 = vld [vmem:[%s422 + $0x6c] sm:$0xf]
        %v659 = vld [vmem:[%s422 + $0x70] sm:$0xf]
        %v660 = vld [vmem:[%s422 + $0x74] sm:$0xf]
        %v661 = vld [vmem:[%s422 + $0x78] sm:$0xf]
        %v662 = vld [vmem:[%s422 + $0x7c] sm:$0xf]
        %v663 = vld [vmem:[%s422 + $0x80] sm:$0xf]
        %v664 = vld [vmem:[%s422 + $0x84] sm:$0xf]
        %v665 = vld [vmem:[%s422 + $0x88] sm:$0xf]
        %v666 = vld [vmem:[%s422 + $0x8c] sm:$0xf]
        %v667 = vld [vmem:[%s422 + $0x90] sm:$0xf]
        %v668 = vld [vmem:[%s422 + $0x94] sm:$0xf]
        %v669 = vld [vmem:[%s422 + $0x98] sm:$0xf]
        %v670 = vld [vmem:[%s422 + $0x9c] sm:$0xf]
        %v671 = vld [vmem:[%s422 + $0xa0] sm:$0xf]
        %v672 = vld [vmem:[%s422 + $0xa4] sm:$0xf]
        %v673 = vld [vmem:[%s422 + $0xa8] sm:$0xf]
        %v674 = vld [vmem:[%s422 + $0xac] sm:$0xf]
        %v675 = vld [vmem:[%s422 + $0xb0] sm:$0xf]
        %v676 = vld [vmem:[%s422 + $0xb4] sm:$0xf]
        %v677 = vld [vmem:[%s422 + $0xb8] sm:$0xf]
        %v678 = vld [vmem:[%s422 + $0xbc] sm:$0xf]
        %v679 = vld [vmem:[%s422 + $0xc0] sm:$0xf]
        %v680 = vld [vmem:[%s422 + $0xc4] sm:$0xf]
        %v681 = vld [vmem:[%s422 + $0xc8] sm:$0xf]
        %v682 = vld [vmem:[%s422 + $0xcc] sm:$0xf]
        %v683 = vld [vmem:[%s422 + $0xd0] sm:$0xf]
        %v684 = vld [vmem:[%s422 + $0xd4] sm:$0xf]
        %v685 = vld [vmem:[%s422 + $0xd8] sm:$0xf]
        %v686 = vld [vmem:[%s422 + $0xdc] sm:$0xf]
        %v687 = vld [vmem:[%s422 + $0xe0] sm:$0xf]
        %v688 = vld [vmem:[%s422 + $0xe4] sm:$0xf]
        %v689 = vld [vmem:[%s422 + $0xe8] sm:$0xf]
        %v690 = vld [vmem:[%s422 + $0xec] sm:$0xf]
        %v691 = vld [vmem:[%s422 + $0xf0] sm:$0xf]
        %v692 = vld [vmem:[%s422 + $0xf4] sm:$0xf]
        %v693 = vld [vmem:[%s422 + $0xf8] sm:$0xf]
        %v694 = vld [vmem:[%s422 + $0xfc] sm:$0xf]
        %v695 = vld [vmem:[%s4] sm:$0xf]
        %v696 = vld [vmem:[%s5] sm:$0x1]
        %v698 = vlaneseq
        %v699 = vshrl.u32 %v698, 7
        %v700 = vsub.s32 0, %v699
        %v701 = vrot.slane %v696, %v700
        %v767 = vunpack.c.l.b16 %v631
        %v768 = vunpack.c.l.b16 %v632
        %v769 = vunpack.c.l.b16 %v633
        %v770 = vunpack.c.l.b16 %v634
        %v771 = vunpack.c.l.b16 %v635
        %v772 = vunpack.c.l.b16 %v636
        %v773 = vunpack.c.l.b16 %v637
        %v774 = vunpack.c.l.b16 %v638
        %v775 = vunpack.c.l.b16 %v639
        %v776 = vunpack.c.l.b16 %v640
        %v777 = vunpack.c.l.b16 %v641
        %v778 = vunpack.c.l.b16 %v642
        %v779 = vunpack.c.l.b16 %v643
        %v780 = vunpack.c.l.b16 %v644
        %v781 = vunpack.c.l.b16 %v645
        %v782 = vunpack.c.l.b16 %v646
        %v783 = vunpack.c.l.b16 %v647
        %v784 = vunpack.c.l.b16 %v648
        %v785 = vunpack.c.l.b16 %v649
        %v786 = vunpack.c.l.b16 %v650
        %v787 = vunpack.c.l.b16 %v651
        %v788 = vunpack.c.l.b16 %v652
        %v789 = vunpack.c.l.b16 %v653
        %v790 = vunpack.c.l.b16 %v654
        %v791 = vunpack.c.l.b16 %v655
        %v792 = vunpack.c.l.b16 %v656
        %v793 = vunpack.c.l.b16 %v657
        %v794 = vunpack.c.l.b16 %v658
        %v795 = vunpack.c.l.b16 %v659
        %v796 = vunpack.c.l.b16 %v660
        %v797 = vunpack.c.l.b16 %v661
        %v798 = vunpack.c.l.b16 %v662
        %v799 = vunpack.c.l.b16 %v663
        %v800 = vunpack.c.l.b16 %v664
        %v801 = vunpack.c.l.b16 %v665
        %v802 = vunpack.c.l.b16 %v666
        %v803 = vunpack.c.l.b16 %v667
        %v804 = vunpack.c.l.b16 %v668
        %v805 = vunpack.c.l.b16 %v669
        %v806 = vunpack.c.l.b16 %v670
        %v807 = vunpack.c.l.b16 %v671
        %v808 = vunpack.c.l.b16 %v672
        %v809 = vunpack.c.l.b16 %v673
        %v810 = vunpack.c.l.b16 %v674
        %v811 = vunpack.c.l.b16 %v675
        %v812 = vunpack.c.l.b16 %v676
        %v813 = vunpack.c.l.b16 %v677
        %v814 = vunpack.c.l.b16 %v678
        %v815 = vunpack.c.l.b16 %v679
        %v816 = vunpack.c.l.b16 %v680
        %v817 = vunpack.c.l.b16 %v681
        %v818 = vunpack.c.l.b16 %v682
        %v819 = vunpack.c.l.b16 %v683
        %v820 = vunpack.c.l.b16 %v684
        %v821 = vunpack.c.l.b16 %v685
        %v822 = vunpack.c.l.b16 %v686
        %v823 = vunpack.c.l.b16 %v687
        %v824 = vunpack.c.l.b16 %v688
        %v825 = vunpack.c.l.b16 %v689
        %v826 = vunpack.c.l.b16 %v690
        %v827 = vunpack.c.l.b16 %v691
        %v828 = vunpack.c.l.b16 %v692
        %v829 = vunpack.c.l.b16 %v693
        %v830 = vunpack.c.l.b16 %v694
        %v831 = vpack.c.b16 %v768, %v767
        %v832 = vpack.c.b16 %v770, %v769
        %v833 = vpack.c.b16 %v772, %v771
        %v834 = vpack.c.b16 %v774, %v773
        %v835 = vpack.c.b16 %v776, %v775
        %v836 = vpack.c.b16 %v778, %v777
        %v837 = vpack.c.b16 %v780, %v779
        %v838 = vpack.c.b16 %v782, %v781
        %v839 = vpack.c.b16 %v784, %v783
        %v840 = vpack.c.b16 %v786, %v785
        %v841 = vpack.c.b16 %v788, %v787
        %v842 = vpack.c.b16 %v790, %v789
        %v843 = vpack.c.b16 %v792, %v791
        %v844 = vpack.c.b16 %v794, %v793
        %v845 = vpack.c.b16 %v796, %v795
        %v846 = vpack.c.b16 %v798, %v797
        %v847 = vpack.c.b16 %v800, %v799
        %v848 = vpack.c.b16 %v802, %v801
        %v849 = vpack.c.b16 %v804, %v803
        %v850 = vpack.c.b16 %v806, %v805
        %v851 = vpack.c.b16 %v808, %v807
        %v852 = vpack.c.b16 %v810, %v809
        %v853 = vpack.c.b16 %v812, %v811
        %v854 = vpack.c.b16 %v814, %v813
        %v855 = vpack.c.b16 %v816, %v815
        %v856 = vpack.c.b16 %v818, %v817
        %v857 = vpack.c.b16 %v820, %v819
        %v858 = vpack.c.b16 %v822, %v821
        %v859 = vpack.c.b16 %v824, %v823
        %v860 = vpack.c.b16 %v826, %v825
        %v861 = vpack.c.b16 %v828, %v827
        %v862 = vpack.c.b16 %v830, %v829
        %v864 = vsel %vm489, %v831, 0
        %v867 = vsel %vm489, %v832, 0
        %v870 = vsel %vm489, %v833, 0
        %v873 = vsel %vm489, %v834, 0
        %v876 = vsel %vm489, %v835, 0
        %v879 = vsel %vm489, %v836, 0
        %v882 = vsel %vm489, %v837, 0
        %v885 = vsel %vm489, %v838, 0
        %v888 = vsel %vm489, %v839, 0
        %v891 = vsel %vm489, %v840, 0
        %v894 = vsel %vm489, %v841, 0
        %v897 = vsel %vm489, %v842, 0
        %v900 = vsel %vm489, %v843, 0
        %v903 = vsel %vm489, %v844, 0
        %v906 = vsel %vm489, %v845, 0
        %v909 = vsel %vm489, %v846, 0
        %v912 = vsel %vm489, %v847, 0
        %v915 = vsel %vm489, %v848, 0
        %v918 = vsel %vm489, %v849, 0
        %v921 = vsel %vm489, %v850, 0
        %v924 = vsel %vm489, %v851, 0
        %v927 = vsel %vm489, %v852, 0
        %v930 = vsel %vm489, %v853, 0
        %v933 = vsel %vm489, %v854, 0
        %v936 = vsel %vm489, %v855, 0
        %v939 = vsel %vm489, %v856, 0
        %v942 = vsel %vm489, %v857, 0
        %v945 = vsel %vm489, %v858, 0
        %v948 = vsel %vm489, %v859, 0
        %v951 = vsel %vm489, %v860, 0
        %v954 = vsel %vm489, %v861, 0
        %v957 = vsel %vm489, %v862, 0
        %v960 = vsel %vm514, %v695, 0
        %962 = vmatprep.subr.bf16.mxu0 0
        %963 = vmatpush1.bf16.msra.mxu0 %v960
        %964 = vmatprep.subr.bf16.mxu0 0
        %965 = vmatpush1.bf16.msra.mxu0 0
        %966 = vmatprep.subr.bf16.mxu0 0
        %967 = vmatpush1.bf16.msra.mxu0 0
        %968 = vmatprep.subr.bf16.mxu0 0
        %969 = vmatpush1.bf16.msra.mxu0 0
        %970 = vmatprep.subr.bf16.mxu0 0
        %971 = vmatpush1.bf16.msra.mxu0 0
        %972 = vmatprep.subr.bf16.mxu0 0
        %973 = vmatpush1.bf16.msra.mxu0 0
        %974 = vmatprep.subr.bf16.mxu0 0
        %975 = vmatpush1.bf16.msra.mxu0 0
        %976 = vmatprep.subr.bf16.mxu0 0
        %977 = vmatpush1.bf16.msra.mxu0 0
        %978 = vmatprep.subr.bf16.mxu0 0
        %979 = vmatpush1.bf16.msra.mxu0 0
        %980 = vmatprep.subr.bf16.mxu0 0
        %981 = vmatpush1.bf16.msra.mxu0 0
        %982 = vmatprep.subr.bf16.mxu0 0
        %983 = vmatpush1.bf16.msra.mxu0 0
        %984 = vmatprep.subr.bf16.mxu0 0
        %985 = vmatpush1.bf16.msra.mxu0 0
        %986 = vmatprep.subr.bf16.mxu0 0
        %987 = vmatpush1.bf16.msra.mxu0 0
        %988 = vmatprep.subr.bf16.mxu0 0
        %989 = vmatpush1.bf16.msra.mxu0 0
        %990 = vmatprep.subr.bf16.mxu0 0
        %991 = vmatpush1.bf16.msra.mxu0 0
        %992 = vmatprep.subr.bf16.mxu0 0
        %993 = vmatpush1.bf16.msra.mxu0 0
        %994 = vmatprep.mubr.bf16.mxu0 0
        %995 = vmatmul.mubr.bf16.gmra.mrb[0].mxu0 %v864
        %v996 = vpop.f32.mrb[0].mxu0
        %v997 = vadd.f32 %v701, %v996
        %v998 = vpop.f32.mrb[0].mxu0
        %v999 = vpop.f32.mrb[0].mxu0
        %v1000 = vadd.f32 %v701, %v999
        %v1001 = vpop.f32.mrb[0].mxu0
        %1002 = vmatprep.mubr.bf16.mxu0 0
        %1003 = vmatmul.mubr.bf16.gmra.mrb[0].mxu0 %v867
        %v1004 = vpop.f32.mrb[0].mxu0
        %v1005 = vadd.f32 %v701, %v1004
        %v1006 = vpop.f32.mrb[0].mxu0
        %v1007 = vpop.f32.mrb[0].mxu0
        %v1008 = vadd.f32 %v701, %v1007
        %v1009 = vpop.f32.mrb[0].mxu0
        %1010 = vmatprep.mubr.bf16.mxu0 0
        %1011 = vmatmul.mubr.bf16.gmra.mrb[0].mxu0 %v870
        %v1012 = vpop.f32.mrb[0].mxu0
        %v1013 = vadd.f32 %v701, %v1012
        %v1014 = vpop.f32.mrb[0].mxu0
        %v1015 = vpop.f32.mrb[0].mxu0
        %v1016 = vadd.f32 %v701, %v1015
        %v1017 = vpop.f32.mrb[0].mxu0
        %1018 = vmatprep.mubr.bf16.mxu0 0
        %1019 = vmatmul.mubr.bf16.gmra.mrb[0].mxu0 %v873
        %v1020 = vpop.f32.mrb[0].mxu0
        %v1021 = vadd.f32 %v701, %v1020
        %v1022 = vpop.f32.mrb[0].mxu0
        %v1023 = vpop.f32.mrb[0].mxu0
        %v1024 = vadd.f32 %v701, %v1023
        %v1025 = vpop.f32.mrb[0].mxu0
        %1026 = vmatprep.mubr.bf16.mxu0 0
        %1027 = vmatmul.mubr.bf16.gmra.mrb[0].mxu0 %v876
        %v1028 = vpop.f32.mrb[0].mxu0
        %v1029 = vadd.f32 %v701, %v1028
        %v1030 = vpop.f32.mrb[0].mxu0
        %v1031 = vpop.f32.mrb[0].mxu0
        %v1032 = vadd.f32 %v701, %v1031
        %v1033 = vpop.f32.mrb[0].mxu0
        %1034 = vmatprep.mubr.bf16.mxu0 0
        %1035 = vmatmul.mubr.bf16.gmra.mrb[0].mxu0 %v879
        %v1036 = vpop.f32.mrb[0].mxu0
        %v1037 = vadd.f32 %v701, %v1036
        %v1038 = vpop.f32.mrb[0].mxu0
        %v1039 = vpop.f32.mrb[0].mxu0
        %v1040 = vadd.f32 %v701, %v1039
        %v1041 = vpop.f32.mrb[0].mxu0
        %1042 = vmatprep.mubr.bf16.mxu0 0
        %1043 = vmatmul.mubr.bf16.gmra.mrb[0].mxu0 %v882
        %v1044 = vpop.f32.mrb[0].mxu0
        %v1045 = vadd.f32 %v701, %v1044
        %v1046 = vpop.f32.mrb[0].mxu0
        %v1047 = vpop.f32.mrb[0].mxu0
        %v1048 = vadd.f32 %v701, %v1047
        %v1049 = vpop.f32.mrb[0].mxu0
        %1050 = vmatprep.mubr.bf16.mxu0 0
        %1051 = vmatmul.mubr.bf16.gmra.mrb[0].mxu0 %v885
        %v1052 = vpop.f32.mrb[0].mxu0
        %v1053 = vadd.f32 %v701, %v1052
        %v1054 = vpop.f32.mrb[0].mxu0
        %v1055 = vpop.f32.mrb[0].mxu0
        %v1056 = vadd.f32 %v701, %v1055
        %v1057 = vpop.f32.mrb[0].mxu0
        %1058 = vmatprep.mubr.bf16.mxu0 0
        %1059 = vmatmul.mubr.bf16.gmra.mrb[0].mxu0 %v888
        %v1060 = vpop.f32.mrb[0].mxu0
        %v1061 = vadd.f32 %v701, %v1060
        %v1062 = vpop.f32.mrb[0].mxu0
        %v1063 = vpop.f32.mrb[0].mxu0
        %v1064 = vadd.f32 %v701, %v1063
        %v1065 = vpop.f32.mrb[0].mxu0
        %1066 = vmatprep.mubr.bf16.mxu0 0
        %1067 = vmatmul.mubr.bf16.gmra.mrb[0].mxu0 %v891
        %v1068 = vpop.f32.mrb[0].mxu0
        %v1069 = vadd.f32 %v701, %v1068
        %v1070 = vpop.f32.mrb[0].mxu0
        %v1071 = vpop.f32.mrb[0].mxu0
        %v1072 = vadd.f32 %v701, %v1071
        %v1073 = vpop.f32.mrb[0].mxu0
        %1074 = vmatprep.mubr.bf16.mxu0 0
        %1075 = vmatmul.mubr.bf16.gmra.mrb[0].mxu0 %v894
        %v1076 = vpop.f32.mrb[0].mxu0
        %v1077 = vadd.f32 %v701, %v1076
        %v1078 = vpop.f32.mrb[0].mxu0
        %v1079 = vpop.f32.mrb[0].mxu0
        %v1080 = vadd.f32 %v701, %v1079
        %v1081 = vpop.f32.mrb[0].mxu0
        %1082 = vmatprep.mubr.bf16.mxu0 0
        %1083 = vmatmul.mubr.bf16.gmra.mrb[0].mxu0 %v897
        %v1084 = vpop.f32.mrb[0].mxu0
        %v1085 = vadd.f32 %v701, %v1084
        %v1086 = vpop.f32.mrb[0].mxu0
        %v1087 = vpop.f32.mrb[0].mxu0
        %v1088 = vadd.f32 %v701, %v1087
        %v1089 = vpop.f32.mrb[0].mxu0
        %1090 = vmatprep.mubr.bf16.mxu0 0
        %1091 = vmatmul.mubr.bf16.gmra.mrb[0].mxu0 %v900
        %v1092 = vpop.f32.mrb[0].mxu0
        %v1093 = vadd.f32 %v701, %v1092
        %v1094 = vpop.f32.mrb[0].mxu0
        %v1095 = vpop.f32.mrb[0].mxu0
        %v1096 = vadd.f32 %v701, %v1095
        %v1097 = vpop.f32.mrb[0].mxu0
        %1098 = vmatprep.mubr.bf16.mxu0 0
        %1099 = vmatmul.mubr.bf16.gmra.mrb[0].mxu0 %v903
        %v1100 = vpop.f32.mrb[0].mxu0
        %v1101 = vadd.f32 %v701, %v1100
        %v1102 = vpop.f32.mrb[0].mxu0
        %v1103 = vpop.f32.mrb[0].mxu0
        %v1104 = vadd.f32 %v701, %v1103
        %v1105 = vpop.f32.mrb[0].mxu0
        %1106 = vmatprep.mubr.bf16.mxu0 0
        %1107 = vmatmul.mubr.bf16.gmra.mrb[0].mxu0 %v906
        %v1108 = vpop.f32.mrb[0].mxu0
        %v1109 = vadd.f32 %v701, %v1108
        %v1110 = vpop.f32.mrb[0].mxu0
        %v1111 = vpop.f32.mrb[0].mxu0
        %v1112 = vadd.f32 %v701, %v1111
        %v1113 = vpop.f32.mrb[0].mxu0
        %1114 = vmatprep.mubr.bf16.mxu0 0
        %1115 = vmatmul.mubr.bf16.gmra.mrb[0].mxu0 %v909
        %v1116 = vpop.f32.mrb[0].mxu0
        %v1117 = vadd.f32 %v701, %v1116
        %v1118 = vpop.f32.mrb[0].mxu0
        %v1119 = vpop.f32.mrb[0].mxu0
        %v1120 = vadd.f32 %v701, %v1119
        %v1121 = vpop.f32.mrb[0].mxu0
        %1122 = vmatprep.mubr.bf16.mxu0 0
        %1123 = vmatmul.mubr.bf16.gmra.mrb[0].mxu0 %v912
        %v1124 = vpop.f32.mrb[0].mxu0
        %v1125 = vadd.f32 %v701, %v1124
        %v1126 = vpop.f32.mrb[0].mxu0
        %v1127 = vpop.f32.mrb[0].mxu0
        %v1128 = vadd.f32 %v701, %v1127
        %v1129 = vpop.f32.mrb[0].mxu0
        %1130 = vmatprep.mubr.bf16.mxu0 0
        %1131 = vmatmul.mubr.bf16.gmra.mrb[0].mxu0 %v915
        %v1132 = vpop.f32.mrb[0].mxu0
        %v1133 = vadd.f32 %v701, %v1132
        %v1134 = vpop.f32.mrb[0].mxu0
        %v1135 = vpop.f32.mrb[0].mxu0
        %v1136 = vadd.f32 %v701, %v1135
        %v1137 = vpop.f32.mrb[0].mxu0
        %1138 = vmatprep.mubr.bf16.mxu0 0
        %1139 = vmatmul.mubr.bf16.gmra.mrb[0].mxu0 %v918
        %v1140 = vpop.f32.mrb[0].mxu0
        %v1141 = vadd.f32 %v701, %v1140
        %v1142 = vpop.f32.mrb[0].mxu0
        %v1143 = vpop.f32.mrb[0].mxu0
        %v1144 = vadd.f32 %v701, %v1143
        %v1145 = vpop.f32.mrb[0].mxu0
        %1146 = vmatprep.mubr.bf16.mxu0 0
        %1147 = vmatmul.mubr.bf16.gmra.mrb[0].mxu0 %v921
        %v1148 = vpop.f32.mrb[0].mxu0
        %v1149 = vadd.f32 %v701, %v1148
        %v1150 = vpop.f32.mrb[0].mxu0
        %v1151 = vpop.f32.mrb[0].mxu0
        %v1152 = vadd.f32 %v701, %v1151
        %v1153 = vpop.f32.mrb[0].mxu0
        %1154 = vmatprep.mubr.bf16.mxu0 0
        %1155 = vmatmul.mubr.bf16.gmra.mrb[0].mxu0 %v924
        %v1156 = vpop.f32.mrb[0].mxu0
        %v1157 = vadd.f32 %v701, %v1156
        %v1158 = vpop.f32.mrb[0].mxu0
        %v1159 = vpop.f32.mrb[0].mxu0
        %v1160 = vadd.f32 %v701, %v1159
        %v1161 = vpop.f32.mrb[0].mxu0
        %1162 = vmatprep.mubr.bf16.mxu0 0
        %1163 = vmatmul.mubr.bf16.gmra.mrb[0].mxu0 %v927
        %v1164 = vpop.f32.mrb[0].mxu0
        %v1165 = vadd.f32 %v701, %v1164
        %v1166 = vpop.f32.mrb[0].mxu0
        %v1167 = vpop.f32.mrb[0].mxu0
        %v1168 = vadd.f32 %v701, %v1167
        %v1169 = vpop.f32.mrb[0].mxu0
        %1170 = vmatprep.mubr.bf16.mxu0 0
        %1171 = vmatmul.mubr.bf16.gmra.mrb[0].mxu0 %v930
        %v1172 = vpop.f32.mrb[0].mxu0
        %v1173 = vadd.f32 %v701, %v1172
        %v1174 = vpop.f32.mrb[0].mxu0
        %v1175 = vpop.f32.mrb[0].mxu0
        %v1176 = vadd.f32 %v701, %v1175
        %v1177 = vpop.f32.mrb[0].mxu0
        %1178 = vmatprep.mubr.bf16.mxu0 0
        %1179 = vmatmul.mubr.bf16.gmra.mrb[0].mxu0 %v933
        %v1180 = vpop.f32.mrb[0].mxu0
        %v1181 = vadd.f32 %v701, %v1180
        %v1182 = vpop.f32.mrb[0].mxu0
        %v1183 = vpop.f32.mrb[0].mxu0
        %v1184 = vadd.f32 %v701, %v1183
        %v1185 = vpop.f32.mrb[0].mxu0
        %1186 = vmatprep.mubr.bf16.mxu0 0
        %1187 = vmatmul.mubr.bf16.gmra.mrb[0].mxu0 %v936
        %v1188 = vpop.f32.mrb[0].mxu0
        %v1189 = vadd.f32 %v701, %v1188
        %v1190 = vpop.f32.mrb[0].mxu0
        %v1191 = vpop.f32.mrb[0].mxu0
        %v1192 = vadd.f32 %v701, %v1191
        %v1193 = vpop.f32.mrb[0].mxu0
        %1194 = vmatprep.mubr.bf16.mxu0 0
        %1195 = vmatmul.mubr.bf16.gmra.mrb[0].mxu0 %v939
        %v1196 = vpop.f32.mrb[0].mxu0
        %v1197 = vadd.f32 %v701, %v1196
        %v1198 = vpop.f32.mrb[0].mxu0
        %v1199 = vpop.f32.mrb[0].mxu0
        %v1200 = vadd.f32 %v701, %v1199
        %v1201 = vpop.f32.mrb[0].mxu0
        %1202 = vmatprep.mubr.bf16.mxu0 0
        %1203 = vmatmul.mubr.bf16.gmra.mrb[0].mxu0 %v942
        %v1204 = vpop.f32.mrb[0].mxu0
        %v1205 = vadd.f32 %v701, %v1204
        %v1206 = vpop.f32.mrb[0].mxu0
        %v1207 = vpop.f32.mrb[0].mxu0
        %v1208 = vadd.f32 %v701, %v1207
        %v1209 = vpop.f32.mrb[0].mxu0
        %1210 = vmatprep.mubr.bf16.mxu0 0
        %1211 = vmatmul.mubr.bf16.gmra.mrb[0].mxu0 %v945
        %v1212 = vpop.f32.mrb[0].mxu0
        %v1213 = vadd.f32 %v701, %v1212
        %v1214 = vpop.f32.mrb[0].mxu0
        %v1215 = vpop.f32.mrb[0].mxu0
        %v1216 = vadd.f32 %v701, %v1215
        %v1217 = vpop.f32.mrb[0].mxu0
        %1218 = vmatprep.mubr.bf16.mxu0 0
        %1219 = vmatmul.mubr.bf16.gmra.mrb[0].mxu0 %v948
        %v1220 = vpop.f32.mrb[0].mxu0
        %v1221 = vadd.f32 %v701, %v1220
        %v1222 = vpop.f32.mrb[0].mxu0
        %v1223 = vpop.f32.mrb[0].mxu0
        %v1224 = vadd.f32 %v701, %v1223
        %v1225 = vpop.f32.mrb[0].mxu0
        %1226 = vmatprep.mubr.bf16.mxu0 0
        %1227 = vmatmul.mubr.bf16.gmra.mrb[0].mxu0 %v951
        %v1228 = vpop.f32.mrb[0].mxu0
        %v1229 = vadd.f32 %v701, %v1228
        %v1230 = vpop.f32.mrb[0].mxu0
        %v1231 = vpop.f32.mrb[0].mxu0
        %v1232 = vadd.f32 %v701, %v1231
        %v1233 = vpop.f32.mrb[0].mxu0
        %1234 = vmatprep.mubr.bf16.mxu0 0
        %1235 = vmatmul.mubr.bf16.gmra.mrb[0].mxu0 %v954
        %v1236 = vpop.f32.mrb[0].mxu0
        %v1237 = vadd.f32 %v701, %v1236
        %v1238 = vpop.f32.mrb[0].mxu0
        %v1239 = vpop.f32.mrb[0].mxu0
        %v1240 = vadd.f32 %v701, %v1239
        %v1241 = vpop.f32.mrb[0].mxu0
        %1242 = vmatprep.mubr.bf16.mxu0 0
        %1243 = vmatmul.mubr.bf16.gmra.mrb[0].mxu0 %v957
        %v1244 = vpop.f32.mrb[0].mxu0
        %v1245 = vadd.f32 %v701, %v1244
        %v1246 = vpop.f32.mrb[0].mxu0
        %v1247 = vpop.f32.mrb[0].mxu0
        %v1248 = vadd.f32 %v701, %v1247
        %v1249 = vpop.f32.mrb[0].mxu0
        %1250 = vdwg.mxu0
        %v1251 = vadd.f32 %v553, %v997
        %v1252 = vadd.f32 %v556, %v1000
        %v1253 = vadd.f32 %v561, %v1005
        %v1254 = vadd.f32 %v564, %v1008
        %v1255 = vadd.f32 %v569, %v1013
        %v1256 = vadd.f32 %v572, %v1016
        %v1257 = vadd.f32 %v577, %v1021
        %v1258 = vadd.f32 %v580, %v1024
        %v1259 = vadd.f32 %v585, %v1029
        %v1260 = vadd.f32 %v588, %v1032
        %v1261 = vadd.f32 %v593, %v1037
        %v1262 = vadd.f32 %v596, %v1040
        %v1263 = vadd.f32 %v601, %v1045
        %v1264 = vadd.f32 %v604, %v1048
        %v1265 = vadd.f32 %v609, %v1053
        %v1266 = vadd.f32 %v612, %v1056
        %v1267 = vadd.f32 %v553, %v1061
        %v1268 = vadd.f32 %v556, %v1064
        %v1269 = vadd.f32 %v561, %v1069
        %v1270 = vadd.f32 %v564, %v1072
        %v1271 = vadd.f32 %v569, %v1077
        %v1272 = vadd.f32 %v572, %v1080
        %v1273 = vadd.f32 %v577, %v1085
        %v1274 = vadd.f32 %v580, %v1088
        %v1275 = vadd.f32 %v585, %v1093
        %v1276 = vadd.f32 %v588, %v1096
        %v1277 = vadd.f32 %v593, %v1101
        %v1278 = vadd.f32 %v596, %v1104
        %v1279 = vadd.f32 %v601, %v1109
        %v1280 = vadd.f32 %v604, %v1112
        %v1281 = vadd.f32 %v609, %v1117
        %v1282 = vadd.f32 %v612, %v1120
        %v1283 = vadd.f32 %v553, %v1125
        %v1284 = vadd.f32 %v556, %v1128
        %v1285 = vadd.f32 %v561, %v1133
        %v1286 = vadd.f32 %v564, %v1136
        %v1287 = vadd.f32 %v569, %v1141
        %v1288 = vadd.f32 %v572, %v1144
        %v1289 = vadd.f32 %v577, %v1149
        %v1290 = vadd.f32 %v580, %v1152
        %v1291 = vadd.f32 %v585, %v1157
        %v1292 = vadd.f32 %v588, %v1160
        %v1293 = vadd.f32 %v593, %v1165
        %v1294 = vadd.f32 %v596, %v1168
        %v1295 = vadd.f32 %v601, %v1173
        %v1296 = vadd.f32 %v604, %v1176
        %v1297 = vadd.f32 %v609, %v1181
        %v1298 = vadd.f32 %v612, %v1184
        %v1299 = vadd.f32 %v553, %v1189
        %v1300 = vadd.f32 %v556, %v1192
        %v1301 = vadd.f32 %v561, %v1197
        %v1302 = vadd.f32 %v564, %v1200
        %v1303 = vadd.f32 %v569, %v1205
        %v1304 = vadd.f32 %v572, %v1208
        %v1305 = vadd.f32 %v577, %v1213
        %v1306 = vadd.f32 %v580, %v1216
        %v1307 = vadd.f32 %v585, %v1221
        %v1308 = vadd.f32 %v588, %v1224
        %v1309 = vadd.f32 %v593, %v1229
        %v1310 = vadd.f32 %v596, %v1232
        %v1311 = vadd.f32 %v601, %v1237
        %v1312 = vadd.f32 %v604, %v1240
        %v1313 = vadd.f32 %v609, %v1245
        %v1314 = vadd.f32 %v612, %v1248
        %vm1315 = vcmp.ge.f32.partialorder %v1251, 0.0
        %vm1316 = vcmp.ge.f32.partialorder %v1252, 0.0
        %vm1317 = vcmp.ge.f32.partialorder %v1253, 0.0
        %vm1318 = vcmp.ge.f32.partialorder %v1254, 0.0
        %vm1319 = vcmp.ge.f32.partialorder %v1255, 0.0
        %vm1320 = vcmp.ge.f32.partialorder %v1256, 0.0
        %vm1321 = vcmp.ge.f32.partialorder %v1257, 0.0
        %vm1322 = vcmp.ge.f32.partialorder %v1258, 0.0
        %vm1323 = vcmp.ge.f32.partialorder %v1259, 0.0
        %vm1324 = vcmp.ge.f32.partialorder %v1260, 0.0
        %vm1325 = vcmp.ge.f32.partialorder %v1261, 0.0
        %vm1326 = vcmp.ge.f32.partialorder %v1262, 0.0
        %vm1327 = vcmp.ge.f32.partialorder %v1263, 0.0
        %vm1328 = vcmp.ge.f32.partialorder %v1264, 0.0
        %vm1329 = vcmp.ge.f32.partialorder %v1265, 0.0
        %vm1330 = vcmp.ge.f32.partialorder %v1266, 0.0
        %vm1331 = vcmp.ge.f32.partialorder %v1267, 0.0
        %vm1332 = vcmp.ge.f32.partialorder %v1268, 0.0
        %vm1333 = vcmp.ge.f32.partialorder %v1269, 0.0
        %vm1334 = vcmp.ge.f32.partialorder %v1270, 0.0
        %vm1335 = vcmp.ge.f32.partialorder %v1271, 0.0
        %vm1336 = vcmp.ge.f32.partialorder %v1272, 0.0
        %vm1337 = vcmp.ge.f32.partialorder %v1273, 0.0
        %vm1338 = vcmp.ge.f32.partialorder %v1274, 0.0
        %vm1339 = vcmp.ge.f32.partialorder %v1275, 0.0
        %vm1340 = vcmp.ge.f32.partialorder %v1276, 0.0
        %vm1341 = vcmp.ge.f32.partialorder %v1277, 0.0
        %vm1342 = vcmp.ge.f32.partialorder %v1278, 0.0
        %vm1343 = vcmp.ge.f32.partialorder %v1279, 0.0
        %vm1344 = vcmp.ge.f32.partialorder %v1280, 0.0
        %vm1345 = vcmp.ge.f32.partialorder %v1281, 0.0
        %vm1346 = vcmp.ge.f32.partialorder %v1282, 0.0
        %vm1347 = vcmp.ge.f32.partialorder %v1283, 0.0
        %vm1348 = vcmp.ge.f32.partialorder %v1284, 0.0
        %vm1349 = vcmp.ge.f32.partialorder %v1285, 0.0
        %vm1350 = vcmp.ge.f32.partialorder %v1286, 0.0
        %vm1351 = vcmp.ge.f32.partialorder %v1287, 0.0
        %vm1352 = vcmp.ge.f32.partialorder %v1288, 0.0
        %vm1353 = vcmp.ge.f32.partialorder %v1289, 0.0
        %vm1354 = vcmp.ge.f32.partialorder %v1290, 0.0
        %vm1355 = vcmp.ge.f32.partialorder %v1291, 0.0
        %vm1356 = vcmp.ge.f32.partialorder %v1292, 0.0
        %vm1357 = vcmp.ge.f32.partialorder %v1293, 0.0
        %vm1358 = vcmp.ge.f32.partialorder %v1294, 0.0
        %vm1359 = vcmp.ge.f32.partialorder %v1295, 0.0
        %vm1360 = vcmp.ge.f32.partialorder %v1296, 0.0
        %vm1361 = vcmp.ge.f32.partialorder %v1297, 0.0
        %vm1362 = vcmp.ge.f32.partialorder %v1298, 0.0
        %vm1363 = vcmp.ge.f32.partialorder %v1299, 0.0
        %vm1364 = vcmp.ge.f32.partialorder %v1300, 0.0
        %vm1365 = vcmp.ge.f32.partialorder %v1301, 0.0
        %vm1366 = vcmp.ge.f32.partialorder %v1302, 0.0
        %vm1367 = vcmp.ge.f32.partialorder %v1303, 0.0
        %vm1368 = vcmp.ge.f32.partialorder %v1304, 0.0
        %vm1369 = vcmp.ge.f32.partialorder %v1305, 0.0
        %vm1370 = vcmp.ge.f32.partialorder %v1306, 0.0
        %vm1371 = vcmp.ge.f32.partialorder %v1307, 0.0
        %vm1372 = vcmp.ge.f32.partialorder %v1308, 0.0
        %vm1373 = vcmp.ge.f32.partialorder %v1309, 0.0
        %vm1374 = vcmp.ge.f32.partialorder %v1310, 0.0
        %vm1375 = vcmp.ge.f32.partialorder %v1311, 0.0
        %vm1376 = vcmp.ge.f32.partialorder %v1312, 0.0
        %vm1377 = vcmp.ge.f32.partialorder %v1313, 0.0
        %vm1378 = vcmp.ge.f32.partialorder %v1314, 0.0
        %v1379 = vmul.f32 %v1251, 0.01
        %v1380 = vmul.f32 %v1252, 0.01
        %v1381 = vmul.f32 %v1253, 0.01
        %v1382 = vmul.f32 %v1254, 0.01
        %v1383 = vmul.f32 %v1255, 0.01
        %v1384 = vmul.f32 %v1256, 0.01
        %v1385 = vmul.f32 %v1257, 0.01
        %v1386 = vmul.f32 %v1258, 0.01
        %v1387 = vmul.f32 %v1259, 0.01
        %v1388 = vmul.f32 %v1260, 0.01
        %v1389 = vmul.f32 %v1261, 0.01
        %v1390 = vmul.f32 %v1262, 0.01
        %v1391 = vmul.f32 %v1263, 0.01
        %v1392 = vmul.f32 %v1264, 0.01
        %v1393 = vmul.f32 %v1265, 0.01
        %v1394 = vmul.f32 %v1266, 0.01
        %v1395 = vmul.f32 %v1267, 0.01
        %v1396 = vmul.f32 %v1268, 0.01
        %v1397 = vmul.f32 %v1269, 0.01
        %v1398 = vmul.f32 %v1270, 0.01
        %v1399 = vmul.f32 %v1271, 0.01
        %v1400 = vmul.f32 %v1272, 0.01
        %v1401 = vmul.f32 %v1273, 0.01
        %v1402 = vmul.f32 %v1274, 0.01
        %v1403 = vmul.f32 %v1275, 0.01
        %v1404 = vmul.f32 %v1276, 0.01
        %v1405 = vmul.f32 %v1277, 0.01
        %v1406 = vmul.f32 %v1278, 0.01
        %v1407 = vmul.f32 %v1279, 0.01
        %v1408 = vmul.f32 %v1280, 0.01
        %v1409 = vmul.f32 %v1281, 0.01
        %v1410 = vmul.f32 %v1282, 0.01
        %v1411 = vmul.f32 %v1283, 0.01
        %v1412 = vmul.f32 %v1284, 0.01
        %v1413 = vmul.f32 %v1285, 0.01
        %v1414 = vmul.f32 %v1286, 0.01
        %v1415 = vmul.f32 %v1287, 0.01
        %v1416 = vmul.f32 %v1288, 0.01
        %v1417 = vmul.f32 %v1289, 0.01
        %v1418 = vmul.f32 %v1290, 0.01
        %v1419 = vmul.f32 %v1291, 0.01
        %v1420 = vmul.f32 %v1292, 0.01
        %v1421 = vmul.f32 %v1293, 0.01
        %v1422 = vmul.f32 %v1294, 0.01
        %v1423 = vmul.f32 %v1295, 0.01
        %v1424 = vmul.f32 %v1296, 0.01
        %v1425 = vmul.f32 %v1297, 0.01
        %v1426 = vmul.f32 %v1298, 0.01
        %v1427 = vmul.f32 %v1299, 0.01
        %v1428 = vmul.f32 %v1300, 0.01
        %v1429 = vmul.f32 %v1301, 0.01
        %v1430 = vmul.f32 %v1302, 0.01
        %v1431 = vmul.f32 %v1303, 0.01
        %v1432 = vmul.f32 %v1304, 0.01
        %v1433 = vmul.f32 %v1305, 0.01
        %v1434 = vmul.f32 %v1306, 0.01
        %v1435 = vmul.f32 %v1307, 0.01
        %v1436 = vmul.f32 %v1308, 0.01
        %v1437 = vmul.f32 %v1309, 0.01
        %v1438 = vmul.f32 %v1310, 0.01
        %v1439 = vmul.f32 %v1311, 0.01
        %v1440 = vmul.f32 %v1312, 0.01
        %v1441 = vmul.f32 %v1313, 0.01
        %v1442 = vmul.f32 %v1314, 0.01
        %v1443 = vsel %vm1315, %v1251, %v1379
        %v1444 = vsel %vm1316, %v1252, %v1380
        %v1445 = vsel %vm1317, %v1253, %v1381
        %v1446 = vsel %vm1318, %v1254, %v1382
        %v1447 = vsel %vm1319, %v1255, %v1383
        %v1448 = vsel %vm1320, %v1256, %v1384
        %v1449 = vsel %vm1321, %v1257, %v1385
        %v1450 = vsel %vm1322, %v1258, %v1386
        %v1451 = vsel %vm1323, %v1259, %v1387
        %v1452 = vsel %vm1324, %v1260, %v1388
        %v1453 = vsel %vm1325, %v1261, %v1389
        %v1454 = vsel %vm1326, %v1262, %v1390
        %v1455 = vsel %vm1327, %v1263, %v1391
        %v1456 = vsel %vm1328, %v1264, %v1392
        %v1457 = vsel %vm1329, %v1265, %v1393
        %v1458 = vsel %vm1330, %v1266, %v1394
        %v1459 = vsel %vm1331, %v1267, %v1395
        %v1460 = vsel %vm1332, %v1268, %v1396
        %v1461 = vsel %vm1333, %v1269, %v1397
        %v1462 = vsel %vm1334, %v1270, %v1398
        %v1463 = vsel %vm1335, %v1271, %v1399
        %v1464 = vsel %vm1336, %v1272, %v1400
        %v1465 = vsel %vm1337, %v1273, %v1401
        %v1466 = vsel %vm1338, %v1274, %v1402
        %v1467 = vsel %vm1339, %v1275, %v1403
        %v1468 = vsel %vm1340, %v1276, %v1404
        %v1469 = vsel %vm1341, %v1277, %v1405
        %v1470 = vsel %vm1342, %v1278, %v1406
        %v1471 = vsel %vm1343, %v1279, %v1407
        %v1472 = vsel %vm1344, %v1280, %v1408
        %v1473 = vsel %vm1345, %v1281, %v1409
        %v1474 = vsel %vm1346, %v1282, %v1410
        %v1475 = vsel %vm1347, %v1283, %v1411
        %v1476 = vsel %vm1348, %v1284, %v1412
        %v1477 = vsel %vm1349, %v1285, %v1413
        %v1478 = vsel %vm1350, %v1286, %v1414
        %v1479 = vsel %vm1351, %v1287, %v1415
        %v1480 = vsel %vm1352, %v1288, %v1416
        %v1481 = vsel %vm1353, %v1289, %v1417
        %v1482 = vsel %vm1354, %v1290, %v1418
        %v1483 = vsel %vm1355, %v1291, %v1419
        %v1484 = vsel %vm1356, %v1292, %v1420
        %v1485 = vsel %vm1357, %v1293, %v1421
        %v1486 = vsel %vm1358, %v1294, %v1422
        %v1487 = vsel %vm1359, %v1295, %v1423
        %v1488 = vsel %vm1360, %v1296, %v1424
        %v1489 = vsel %vm1361, %v1297, %v1425
        %v1490 = vsel %vm1362, %v1298, %v1426
        %v1491 = vsel %vm1363, %v1299, %v1427
        %v1492 = vsel %vm1364, %v1300, %v1428
        %v1493 = vsel %vm1365, %v1301, %v1429
        %v1494 = vsel %vm1366, %v1302, %v1430
        %v1495 = vsel %vm1367, %v1303, %v1431
        %v1496 = vsel %vm1368, %v1304, %v1432
        %v1497 = vsel %vm1369, %v1305, %v1433
        %v1498 = vsel %vm1370, %v1306, %v1434
        %v1499 = vsel %vm1371, %v1307, %v1435
        %v1500 = vsel %vm1372, %v1308, %v1436
        %v1501 = vsel %vm1373, %v1309, %v1437
        %v1502 = vsel %vm1374, %v1310, %v1438
        %v1503 = vsel %vm1375, %v1311, %v1439
        %v1504 = vsel %vm1376, %v1312, %v1440
        %v1505 = vsel %vm1377, %v1313, %v1441
        %v1506 = vsel %vm1378, %v1314, %v1442
        %v1507 = vpack.c.bf16 %v1444, %v1443
        %v1508 = vpack.c.bf16 %v1446, %v1445
        %v1509 = vpack.c.bf16 %v1448, %v1447
        %v1510 = vpack.c.bf16 %v1450, %v1449
        %v1511 = vpack.c.bf16 %v1452, %v1451
        %v1512 = vpack.c.bf16 %v1454, %v1453
        %v1513 = vpack.c.bf16 %v1456, %v1455
        %v1514 = vpack.c.bf16 %v1458, %v1457
        %v1515 = vpack.c.bf16 %v1460, %v1459
        %v1516 = vpack.c.bf16 %v1462, %v1461
        %v1517 = vpack.c.bf16 %v1464, %v1463
        %v1518 = vpack.c.bf16 %v1466, %v1465
        %v1519 = vpack.c.bf16 %v1468, %v1467
        %v1520 = vpack.c.bf16 %v1470, %v1469
        %v1521 = vpack.c.bf16 %v1472, %v1471
        %v1522 = vpack.c.bf16 %v1474, %v1473
        %v1523 = vpack.c.bf16 %v1476, %v1475
        %v1524 = vpack.c.bf16 %v1478, %v1477
        %v1525 = vpack.c.bf16 %v1480, %v1479
        %v1526 = vpack.c.bf16 %v1482, %v1481
        %v1527 = vpack.c.bf16 %v1484, %v1483
        %v1528 = vpack.c.bf16 %v1486, %v1485
        %v1529 = vpack.c.bf16 %v1488, %v1487
        %v1530 = vpack.c.bf16 %v1490, %v1489
        %v1531 = vpack.c.bf16 %v1492, %v1491
        %v1532 = vpack.c.bf16 %v1494, %v1493
        %v1533 = vpack.c.bf16 %v1496, %v1495
        %v1534 = vpack.c.bf16 %v1498, %v1497
        %v1535 = vpack.c.bf16 %v1500, %v1499
        %v1536 = vpack.c.bf16 %v1502, %v1501
        %v1537 = vpack.c.bf16 %v1504, %v1503
        %v1538 = vpack.c.bf16 %v1506, %v1505
        %v1539 = vld [vmem:[%s6] sm:$0xf]
        %v1540 = vld [vmem:[%s6 + $0x4] sm:$0xf]
        %v1541 = vld [vmem:[%s7] sm:$0x1]
        %v1543 = vlaneseq
        %v1544 = vshrl.u32 %v1543, 7
        %v1545 = vsub.s32 0, %v1544
        %v1546 = vrot.slane %v1541, %v1545
        %1580 = vrot.lane.b32.xlu0 %v1507, 120
        %v1581 = vpop.permute.xlu0 %1580
        %1582 = vrot.lane.b32.xlu0 %v1508, 120
        %v1583 = vpop.permute.xlu0 %1582
        %1584 = vrot.lane.b32.xlu0 %v1509, 120
        %v1585 = vpop.permute.xlu0 %1584
        %1586 = vrot.lane.b32.xlu0 %v1510, 120
        %v1587 = vpop.permute.xlu0 %1586
        %1588 = vrot.lane.b32.xlu0 %v1511, 120
        %v1589 = vpop.permute.xlu0 %1588
        %1590 = vrot.lane.b32.xlu0 %v1512, 120
        %v1591 = vpop.permute.xlu0 %1590
        %1592 = vrot.lane.b32.xlu0 %v1513, 120
        %v1593 = vpop.permute.xlu0 %1592
        %1594 = vrot.lane.b32.xlu0 %v1514, 120
        %v1595 = vpop.permute.xlu0 %1594
        %1596 = vrot.lane.b32.xlu0 %v1515, 120
        %v1597 = vpop.permute.xlu0 %1596
        %1598 = vrot.lane.b32.xlu0 %v1516, 120
        %v1599 = vpop.permute.xlu0 %1598
        %1600 = vrot.lane.b32.xlu0 %v1517, 120
        %v1601 = vpop.permute.xlu0 %1600
        %1602 = vrot.lane.b32.xlu0 %v1518, 120
        %v1603 = vpop.permute.xlu0 %1602
        %1604 = vrot.lane.b32.xlu0 %v1519, 120
        %v1605 = vpop.permute.xlu0 %1604
        %1606 = vrot.lane.b32.xlu0 %v1520, 120
        %v1607 = vpop.permute.xlu0 %1606
        %1608 = vrot.lane.b32.xlu0 %v1521, 120
        %v1609 = vpop.permute.xlu0 %1608
        %1610 = vrot.lane.b32.xlu0 %v1522, 120
        %v1611 = vpop.permute.xlu0 %1610
        %1612 = vrot.lane.b32.xlu0 %v1523, 120
        %v1613 = vpop.permute.xlu0 %1612
        %1614 = vrot.lane.b32.xlu0 %v1524, 120
        %v1615 = vpop.permute.xlu0 %1614
        %1616 = vrot.lane.b32.xlu0 %v1525, 120
        %v1617 = vpop.permute.xlu0 %1616
        %1618 = vrot.lane.b32.xlu0 %v1526, 120
        %v1619 = vpop.permute.xlu0 %1618
        %1620 = vrot.lane.b32.xlu0 %v1527, 120
        %v1621 = vpop.permute.xlu0 %1620
        %1622 = vrot.lane.b32.xlu0 %v1528, 120
        %v1623 = vpop.permute.xlu0 %1622
        %1624 = vrot.lane.b32.xlu0 %v1529, 120
        %v1625 = vpop.permute.xlu0 %1624
        %1626 = vrot.lane.b32.xlu0 %v1530, 120
        %v1627 = vpop.permute.xlu0 %1626
        %1628 = vrot.lane.b32.xlu0 %v1531, 120
        %v1629 = vpop.permute.xlu0 %1628
        %1630 = vrot.lane.b32.xlu0 %v1532, 120
        %v1631 = vpop.permute.xlu0 %1630
        %1632 = vrot.lane.b32.xlu0 %v1533, 120
        %v1633 = vpop.permute.xlu0 %1632
        %1634 = vrot.lane.b32.xlu0 %v1534, 120
        %v1635 = vpop.permute.xlu0 %1634
        %1636 = vrot.lane.b32.xlu0 %v1535, 120
        %v1637 = vpop.permute.xlu0 %1636
        %1638 = vrot.lane.b32.xlu0 %v1536, 120
        %v1639 = vpop.permute.xlu0 %1638
        %1640 = vrot.lane.b32.xlu0 %v1537, 120
        %v1641 = vpop.permute.xlu0 %1640
        %1642 = vrot.lane.b32.xlu0 %v1538, 120
        %v1643 = vpop.permute.xlu0 %1642
        %v1646 = vunpack.c.l.b16 %v1539
        %v1647 = vunpack.c.l.b16 %v1540
        %v1648 = vpack.c.b16 %v1647, %v1646
        %vm1650 = vcmask 130048
        %v1652 = vsel %vm1650, %v1581, 0
        %v1655 = vsel %vm1650, %v1583, 0
        %v1658 = vsel %vm1650, %v1585, 0
        %v1661 = vsel %vm1650, %v1587, 0
        %v1664 = vsel %vm1650, %v1589, 0
        %v1667 = vsel %vm1650, %v1591, 0
        %v1670 = vsel %vm1650, %v1593, 0
        %v1673 = vsel %vm1650, %v1595, 0
        %v1676 = vsel %vm1650, %v1597, 0
        %v1679 = vsel %vm1650, %v1599, 0
        %v1682 = vsel %vm1650, %v1601, 0
        %v1685 = vsel %vm1650, %v1603, 0
        %v1688 = vsel %vm1650, %v1605, 0
        %v1691 = vsel %vm1650, %v1607, 0
        %v1694 = vsel %vm1650, %v1609, 0
        %v1697 = vsel %vm1650, %v1611, 0
        %v1700 = vsel %vm1650, %v1613, 0
        %v1703 = vsel %vm1650, %v1615, 0
        %v1706 = vsel %vm1650, %v1617, 0
        %v1709 = vsel %vm1650, %v1619, 0
        %v1712 = vsel %vm1650, %v1621, 0
        %v1715 = vsel %vm1650, %v1623, 0
        %v1718 = vsel %vm1650, %v1625, 0
        %v1721 = vsel %vm1650, %v1627, 0
        %v1724 = vsel %vm1650, %v1629, 0
        %v1727 = vsel %vm1650, %v1631, 0
        %v1730 = vsel %vm1650, %v1633, 0
        %v1733 = vsel %vm1650, %v1635, 0
        %v1736 = vsel %vm1650, %v1637, 0
        %v1739 = vsel %vm1650, %v1639, 0
        %v1742 = vsel %vm1650, %v1641, 0
        %v1745 = vsel %vm1650, %v1643, 0
        %1747 = vmatprep.subr.bf16.mxu0 0
        %1748 = vmatpush1.bf16.msra.mxu0 %v1648
        %1749 = vmatprep.subr.bf16.mxu0 0
        %1750 = vmatpush1.bf16.msra.mxu0 0
        %1751 = vmatprep.subr.bf16.mxu0 0
        %1752 = vmatpush1.bf16.msra.mxu0 0
        %1753 = vmatprep.subr.bf16.mxu0 0
        %1754 = vmatpush1.bf16.msra.mxu0 0
        %1755 = vmatprep.subr.bf16.mxu0 0
        %1756 = vmatpush1.bf16.msra.mxu0 0
        %1757 = vmatprep.subr.bf16.mxu0 0
        %1758 = vmatpush1.bf16.msra.mxu0 0
        %1759 = vmatprep.subr.bf16.mxu0 0
        %1760 = vmatpush1.bf16.msra.mxu0 0
        %1761 = vmatprep.subr.bf16.mxu0 0
        %1762 = vmatpush1.bf16.msra.mxu0 0
        %1763 = vmatprep.subr.bf16.mxu0 0
        %1764 = vmatpush1.bf16.msra.mxu0 0
        %1765 = vmatprep.subr.bf16.mxu0 0
        %1766 = vmatpush1.bf16.msra.mxu0 0
        %1767 = vmatprep.subr.bf16.mxu0 0
        %1768 = vmatpush1.bf16.msra.mxu0 0
        %1769 = vmatprep.subr.bf16.mxu0 0
        %1770 = vmatpush1.bf16.msra.mxu0 0
        %1771 = vmatprep.subr.bf16.mxu0 0
        %1772 = vmatpush1.bf16.msra.mxu0 0
        %1773 = vmatprep.subr.bf16.mxu0 0
        %1774 = vmatpush1.bf16.msra.mxu0 0
        %1775 = vmatprep.subr.bf16.mxu0 0
        %1776 = vmatpush1.bf16.msra.mxu0 0
        %1777 = vmatprep.subr.bf16.mxu0 0
        %1778 = vmatpush1.bf16.msra.mxu0 0
        %1779 = vmatprep.mubr.bf16.mxu0 0
        %1780 = vmatmul.mubr.bf16.gmra.mrb[0].mxu0 %v1652
        %v1781 = vpop.f32.mrb[0].mxu0
        %v1782 = vadd.f32 %v1546, %v1781
        %v1783 = vpop.f32.mrb[0].mxu0
        %v1784 = vpop.f32.mrb[0].mxu0
        %v1785 = vadd.f32 %v1546, %v1784
        %v1786 = vpop.f32.mrb[0].mxu0
        %1787 = vmatprep.mubr.bf16.mxu0 0
        %1788 = vmatmul.mubr.bf16.gmra.mrb[0].mxu0 %v1655
        %v1789 = vpop.f32.mrb[0].mxu0
        %v1790 = vadd.f32 %v1546, %v1789
        %v1791 = vpop.f32.mrb[0].mxu0
        %v1792 = vpop.f32.mrb[0].mxu0
        %v1793 = vadd.f32 %v1546, %v1792
        %v1794 = vpop.f32.mrb[0].mxu0
        %1795 = vmatprep.mubr.bf16.mxu0 0
        %1796 = vmatmul.mubr.bf16.gmra.mrb[0].mxu0 %v1658
        %v1797 = vpop.f32.mrb[0].mxu0
        %v1798 = vadd.f32 %v1546, %v1797
        %v1799 = vpop.f32.mrb[0].mxu0
        %v1800 = vpop.f32.mrb[0].mxu0
        %v1801 = vadd.f32 %v1546, %v1800
        %v1802 = vpop.f32.mrb[0].mxu0
        %1803 = vmatprep.mubr.bf16.mxu0 0
        %1804 = vmatmul.mubr.bf16.gmra.mrb[0].mxu0 %v1661
        %v1805 = vpop.f32.mrb[0].mxu0
        %v1806 = vadd.f32 %v1546, %v1805
        %v1807 = vpop.f32.mrb[0].mxu0
        %v1808 = vpop.f32.mrb[0].mxu0
        %v1809 = vadd.f32 %v1546, %v1808
        %v1810 = vpop.f32.mrb[0].mxu0
        %1811 = vmatprep.mubr.bf16.mxu0 0
        %1812 = vmatmul.mubr.bf16.gmra.mrb[0].mxu0 %v1664
        %v1813 = vpop.f32.mrb[0].mxu0
        %v1814 = vadd.f32 %v1546, %v1813
        %v1815 = vpop.f32.mrb[0].mxu0
        %v1816 = vpop.f32.mrb[0].mxu0
        %v1817 = vadd.f32 %v1546, %v1816
        %v1818 = vpop.f32.mrb[0].mxu0
        %1819 = vmatprep.mubr.bf16.mxu0 0
        %1820 = vmatmul.mubr.bf16.gmra.mrb[0].mxu0 %v1667
        %v1821 = vpop.f32.mrb[0].mxu0
        %v1822 = vadd.f32 %v1546, %v1821
        %v1823 = vpop.f32.mrb[0].mxu0
        %v1824 = vpop.f32.mrb[0].mxu0
        %v1825 = vadd.f32 %v1546, %v1824
        %v1826 = vpop.f32.mrb[0].mxu0
        %1827 = vmatprep.mubr.bf16.mxu0 0
        %1828 = vmatmul.mubr.bf16.gmra.mrb[0].mxu0 %v1670
        %v1829 = vpop.f32.mrb[0].mxu0
        %v1830 = vadd.f32 %v1546, %v1829
        %v1831 = vpop.f32.mrb[0].mxu0
        %v1832 = vpop.f32.mrb[0].mxu0
        %v1833 = vadd.f32 %v1546, %v1832
        %v1834 = vpop.f32.mrb[0].mxu0
        %1835 = vmatprep.mubr.bf16.mxu0 0
        %1836 = vmatmul.mubr.bf16.gmra.mrb[0].mxu0 %v1673
        %v1837 = vpop.f32.mrb[0].mxu0
        %v1838 = vadd.f32 %v1546, %v1837
        %v1839 = vpop.f32.mrb[0].mxu0
        %v1840 = vpop.f32.mrb[0].mxu0
        %v1841 = vadd.f32 %v1546, %v1840
        %v1842 = vpop.f32.mrb[0].mxu0
        %1843 = vmatprep.mubr.bf16.mxu0 0
        %1844 = vmatmul.mubr.bf16.gmra.mrb[0].mxu0 %v1676
        %v1845 = vpop.f32.mrb[0].mxu0
        %v1846 = vadd.f32 %v1546, %v1845
        %v1847 = vpop.f32.mrb[0].mxu0
        %v1848 = vpop.f32.mrb[0].mxu0
        %v1849 = vadd.f32 %v1546, %v1848
        %v1850 = vpop.f32.mrb[0].mxu0
        %1851 = vmatprep.mubr.bf16.mxu0 0
        %1852 = vmatmul.mubr.bf16.gmra.mrb[0].mxu0 %v1679
        %v1853 = vpop.f32.mrb[0].mxu0
        %v1854 = vadd.f32 %v1546, %v1853
        %v1855 = vpop.f32.mrb[0].mxu0
        %v1856 = vpop.f32.mrb[0].mxu0
        %v1857 = vadd.f32 %v1546, %v1856
        %v1858 = vpop.f32.mrb[0].mxu0
        %1859 = vmatprep.mubr.bf16.mxu0 0
        %1860 = vmatmul.mubr.bf16.gmra.mrb[0].mxu0 %v1682
        %v1861 = vpop.f32.mrb[0].mxu0
        %v1862 = vadd.f32 %v1546, %v1861
        %v1863 = vpop.f32.mrb[0].mxu0
        %v1864 = vpop.f32.mrb[0].mxu0
        %v1865 = vadd.f32 %v1546, %v1864
        %v1866 = vpop.f32.mrb[0].mxu0
        %1867 = vmatprep.mubr.bf16.mxu0 0
        %1868 = vmatmul.mubr.bf16.gmra.mrb[0].mxu0 %v1685
        %v1869 = vpop.f32.mrb[0].mxu0
        %v1870 = vadd.f32 %v1546, %v1869
        %v1871 = vpop.f32.mrb[0].mxu0
        %v1872 = vpop.f32.mrb[0].mxu0
        %v1873 = vadd.f32 %v1546, %v1872
        %v1874 = vpop.f32.mrb[0].mxu0
        %1875 = vmatprep.mubr.bf16.mxu0 0
        %1876 = vmatmul.mubr.bf16.gmra.mrb[0].mxu0 %v1688
        %v1877 = vpop.f32.mrb[0].mxu0
        %v1878 = vadd.f32 %v1546, %v1877
        %v1879 = vpop.f32.mrb[0].mxu0
        %v1880 = vpop.f32.mrb[0].mxu0
        %v1881 = vadd.f32 %v1546, %v1880
        %v1882 = vpop.f32.mrb[0].mxu0
        %1883 = vmatprep.mubr.bf16.mxu0 0
        %1884 = vmatmul.mubr.bf16.gmra.mrb[0].mxu0 %v1691
        %v1885 = vpop.f32.mrb[0].mxu0
        %v1886 = vadd.f32 %v1546, %v1885
        %v1887 = vpop.f32.mrb[0].mxu0
        %v1888 = vpop.f32.mrb[0].mxu0
        %v1889 = vadd.f32 %v1546, %v1888
        %v1890 = vpop.f32.mrb[0].mxu0
        %1891 = vmatprep.mubr.bf16.mxu0 0
        %1892 = vmatmul.mubr.bf16.gmra.mrb[0].mxu0 %v1694
        %v1893 = vpop.f32.mrb[0].mxu0
        %v1894 = vadd.f32 %v1546, %v1893
        %v1895 = vpop.f32.mrb[0].mxu0
        %v1896 = vpop.f32.mrb[0].mxu0
        %v1897 = vadd.f32 %v1546, %v1896
        %v1898 = vpop.f32.mrb[0].mxu0
        %1899 = vmatprep.mubr.bf16.mxu0 0
        %1900 = vmatmul.mubr.bf16.gmra.mrb[0].mxu0 %v1697
        %v1901 = vpop.f32.mrb[0].mxu0
        %v1902 = vadd.f32 %v1546, %v1901
        %v1903 = vpop.f32.mrb[0].mxu0
        %v1904 = vpop.f32.mrb[0].mxu0
        %v1905 = vadd.f32 %v1546, %v1904
        %v1906 = vpop.f32.mrb[0].mxu0
        %1907 = vmatprep.mubr.bf16.mxu0 0
        %1908 = vmatmul.mubr.bf16.gmra.mrb[0].mxu0 %v1700
        %v1909 = vpop.f32.mrb[0].mxu0
        %v1910 = vadd.f32 %v1546, %v1909
        %v1911 = vpop.f32.mrb[0].mxu0
        %v1912 = vpop.f32.mrb[0].mxu0
        %v1913 = vadd.f32 %v1546, %v1912
        %v1914 = vpop.f32.mrb[0].mxu0
        %1915 = vmatprep.mubr.bf16.mxu0 0
        %1916 = vmatmul.mubr.bf16.gmra.mrb[0].mxu0 %v1703
        %v1917 = vpop.f32.mrb[0].mxu0
        %v1918 = vadd.f32 %v1546, %v1917
        %v1919 = vpop.f32.mrb[0].mxu0
        %v1920 = vpop.f32.mrb[0].mxu0
        %v1921 = vadd.f32 %v1546, %v1920
        %v1922 = vpop.f32.mrb[0].mxu0
        %1923 = vmatprep.mubr.bf16.mxu0 0
        %1924 = vmatmul.mubr.bf16.gmra.mrb[0].mxu0 %v1706
        %v1925 = vpop.f32.mrb[0].mxu0
        %v1926 = vadd.f32 %v1546, %v1925
        %v1927 = vpop.f32.mrb[0].mxu0
        %v1928 = vpop.f32.mrb[0].mxu0
        %v1929 = vadd.f32 %v1546, %v1928
        %v1930 = vpop.f32.mrb[0].mxu0
        %1931 = vmatprep.mubr.bf16.mxu0 0
        %1932 = vmatmul.mubr.bf16.gmra.mrb[0].mxu0 %v1709
        %v1933 = vpop.f32.mrb[0].mxu0
        %v1934 = vadd.f32 %v1546, %v1933
        %v1935 = vpop.f32.mrb[0].mxu0
        %v1936 = vpop.f32.mrb[0].mxu0
        %v1937 = vadd.f32 %v1546, %v1936
        %v1938 = vpop.f32.mrb[0].mxu0
        %1939 = vmatprep.mubr.bf16.mxu0 0
        %1940 = vmatmul.mubr.bf16.gmra.mrb[0].mxu0 %v1712
        %v1941 = vpop.f32.mrb[0].mxu0
        %v1942 = vadd.f32 %v1546, %v1941
        %v1943 = vpop.f32.mrb[0].mxu0
        %v1944 = vpop.f32.mrb[0].mxu0
        %v1945 = vadd.f32 %v1546, %v1944
        %v1946 = vpop.f32.mrb[0].mxu0
        %1947 = vmatprep.mubr.bf16.mxu0 0
        %1948 = vmatmul.mubr.bf16.gmra.mrb[0].mxu0 %v1715
        %v1949 = vpop.f32.mrb[0].mxu0
        %v1950 = vadd.f32 %v1546, %v1949
        %v1951 = vpop.f32.mrb[0].mxu0
        %v1952 = vpop.f32.mrb[0].mxu0
        %v1953 = vadd.f32 %v1546, %v1952
        %v1954 = vpop.f32.mrb[0].mxu0
        %1955 = vmatprep.mubr.bf16.mxu0 0
        %1956 = vmatmul.mubr.bf16.gmra.mrb[0].mxu0 %v1718
        %v1957 = vpop.f32.mrb[0].mxu0
        %v1958 = vadd.f32 %v1546, %v1957
        %v1959 = vpop.f32.mrb[0].mxu0
        %v1960 = vpop.f32.mrb[0].mxu0
        %v1961 = vadd.f32 %v1546, %v1960
        %v1962 = vpop.f32.mrb[0].mxu0
        %1963 = vmatprep.mubr.bf16.mxu0 0
        %1964 = vmatmul.mubr.bf16.gmra.mrb[0].mxu0 %v1721
        %v1965 = vpop.f32.mrb[0].mxu0
        %v1966 = vadd.f32 %v1546, %v1965
        %v1967 = vpop.f32.mrb[0].mxu0
        %v1968 = vpop.f32.mrb[0].mxu0
        %v1969 = vadd.f32 %v1546, %v1968
        %v1970 = vpop.f32.mrb[0].mxu0
        %1971 = vmatprep.mubr.bf16.mxu0 0
        %1972 = vmatmul.mubr.bf16.gmra.mrb[0].mxu0 %v1724
        %v1973 = vpop.f32.mrb[0].mxu0
        %v1974 = vadd.f32 %v1546, %v1973
        %v1975 = vpop.f32.mrb[0].mxu0
        %v1976 = vpop.f32.mrb[0].mxu0
        %v1977 = vadd.f32 %v1546, %v1976
        %v1978 = vpop.f32.mrb[0].mxu0
        %1979 = vmatprep.mubr.bf16.mxu0 0
        %1980 = vmatmul.mubr.bf16.gmra.mrb[0].mxu0 %v1727
        %v1981 = vpop.f32.mrb[0].mxu0
        %v1982 = vadd.f32 %v1546, %v1981
        %v1983 = vpop.f32.mrb[0].mxu0
        %v1984 = vpop.f32.mrb[0].mxu0
        %v1985 = vadd.f32 %v1546, %v1984
        %v1986 = vpop.f32.mrb[0].mxu0
        %1987 = vmatprep.mubr.bf16.mxu0 0
        %1988 = vmatmul.mubr.bf16.gmra.mrb[0].mxu0 %v1730
        %v1989 = vpop.f32.mrb[0].mxu0
        %v1990 = vadd.f32 %v1546, %v1989
        %v1991 = vpop.f32.mrb[0].mxu0
        %v1992 = vpop.f32.mrb[0].mxu0
        %v1993 = vadd.f32 %v1546, %v1992
        %v1994 = vpop.f32.mrb[0].mxu0
        %1995 = vmatprep.mubr.bf16.mxu0 0
        %1996 = vmatmul.mubr.bf16.gmra.mrb[0].mxu0 %v1733
        %v1997 = vpop.f32.mrb[0].mxu0
        %v1998 = vadd.f32 %v1546, %v1997
        %v1999 = vpop.f32.mrb[0].mxu0
        %v2000 = vpop.f32.mrb[0].mxu0
        %v2001 = vadd.f32 %v1546, %v2000
        %v2002 = vpop.f32.mrb[0].mxu0
        %2003 = vmatprep.mubr.bf16.mxu0 0
        %2004 = vmatmul.mubr.bf16.gmra.mrb[0].mxu0 %v1736
        %v2005 = vpop.f32.mrb[0].mxu0
        %v2006 = vadd.f32 %v1546, %v2005
        %v2007 = vpop.f32.mrb[0].mxu0
        %v2008 = vpop.f32.mrb[0].mxu0
        %v2009 = vadd.f32 %v1546, %v2008
        %v2010 = vpop.f32.mrb[0].mxu0
        %2011 = vmatprep.mubr.bf16.mxu0 0
        %2012 = vmatmul.mubr.bf16.gmra.mrb[0].mxu0 %v1739
        %v2013 = vpop.f32.mrb[0].mxu0
        %v2014 = vadd.f32 %v1546, %v2013
        %v2015 = vpop.f32.mrb[0].mxu0
        %v2016 = vpop.f32.mrb[0].mxu0
        %v2017 = vadd.f32 %v1546, %v2016
        %v2018 = vpop.f32.mrb[0].mxu0
        %2019 = vmatprep.mubr.bf16.mxu0 0
        %2020 = vmatmul.mubr.bf16.gmra.mrb[0].mxu0 %v1742
        %v2021 = vpop.f32.mrb[0].mxu0
        %v2022 = vadd.f32 %v1546, %v2021
        %v2023 = vpop.f32.mrb[0].mxu0
        %v2024 = vpop.f32.mrb[0].mxu0
        %v2025 = vadd.f32 %v1546, %v2024
        %v2026 = vpop.f32.mrb[0].mxu0
        %2027 = vmatprep.mubr.bf16.mxu0 0
        %2028 = vmatmul.mubr.bf16.gmra.mrb[0].mxu0 %v1745
        %v2029 = vpop.f32.mrb[0].mxu0
        %v2030 = vadd.f32 %v1546, %v2029
        %v2031 = vpop.f32.mrb[0].mxu0
        %v2032 = vpop.f32.mrb[0].mxu0
        %v2033 = vadd.f32 %v1546, %v2032
        %v2034 = vpop.f32.mrb[0].mxu0
        %2035 = vdwg.mxu0
        %v2036 = vsub.f32 %v997, %v553
        %v2037 = vsub.f32 %v1000, %v556
        %v2038 = vsub.f32 %v1005, %v561
        %v2039 = vsub.f32 %v1008, %v564
        %v2040 = vsub.f32 %v1013, %v569
        %v2041 = vsub.f32 %v1016, %v572
        %v2042 = vsub.f32 %v1021, %v577
        %v2043 = vsub.f32 %v1024, %v580
        %v2044 = vsub.f32 %v1029, %v585
        %v2045 = vsub.f32 %v1032, %v588
        %v2046 = vsub.f32 %v1037, %v593
        %v2047 = vsub.f32 %v1040, %v596
        %v2048 = vsub.f32 %v1045, %v601
        %v2049 = vsub.f32 %v1048, %v604
        %v2050 = vsub.f32 %v1053, %v609
        %v2051 = vsub.f32 %v1056, %v612
        %v2052 = vsub.f32 %v1061, %v553
        %v2053 = vsub.f32 %v1064, %v556
        %v2054 = vsub.f32 %v1069, %v561
        %v2055 = vsub.f32 %v1072, %v564
        %v2056 = vsub.f32 %v1077, %v569
        %v2057 = vsub.f32 %v1080, %v572
        %v2058 = vsub.f32 %v1085, %v577
        %v2059 = vsub.f32 %v1088, %v580
        %v2060 = vsub.f32 %v1093, %v585
        %v2061 = vsub.f32 %v1096, %v588
        %v2062 = vsub.f32 %v1101, %v593
        %v2063 = vsub.f32 %v1104, %v596
        %v2064 = vsub.f32 %v1109, %v601
        %v2065 = vsub.f32 %v1112, %v604
        %v2066 = vsub.f32 %v1117, %v609
        %v2067 = vsub.f32 %v1120, %v612
        %v2068 = vsub.f32 %v1125, %v553
        %v2069 = vsub.f32 %v1128, %v556
        %v2070 = vsub.f32 %v1133, %v561
        %v2071 = vsub.f32 %v1136, %v564
        %v2072 = vsub.f32 %v1141, %v569
        %v2073 = vsub.f32 %v1144, %v572
        %v2074 = vsub.f32 %v1149, %v577
        %v2075 = vsub.f32 %v1152, %v580
        %v2076 = vsub.f32 %v1157, %v585
        %v2077 = vsub.f32 %v1160, %v588
        %v2078 = vsub.f32 %v1165, %v593
        %v2079 = vsub.f32 %v1168, %v596
        %v2080 = vsub.f32 %v1173, %v601
        %v2081 = vsub.f32 %v1176, %v604
        %v2082 = vsub.f32 %v1181, %v609
        %v2083 = vsub.f32 %v1184, %v612
        %v2084 = vsub.f32 %v1189, %v553
        %v2085 = vsub.f32 %v1192, %v556
        %v2086 = vsub.f32 %v1197, %v561
        %v2087 = vsub.f32 %v1200, %v564
        %v2088 = vsub.f32 %v1205, %v569
        %v2089 = vsub.f32 %v1208, %v572
        %v2090 = vsub.f32 %v1213, %v577
        %v2091 = vsub.f32 %v1216, %v580
        %v2092 = vsub.f32 %v1221, %v585
        %v2093 = vsub.f32 %v1224, %v588
        %v2094 = vsub.f32 %v1229, %v593
        %v2095 = vsub.f32 %v1232, %v596
        %v2096 = vsub.f32 %v1237, %v601
        %v2097 = vsub.f32 %v1240, %v604
        %v2098 = vsub.f32 %v1245, %v609
        %v2099 = vsub.f32 %v1248, %v612
        %v2100 = vmul.f32 %v2036, %v1782
        %v2101 = vmul.f32 %v2037, %v1785
        %v2102 = vmul.f32 %v2038, %v1790
        %v2103 = vmul.f32 %v2039, %v1793
        %v2104 = vmul.f32 %v2040, %v1798
        %v2105 = vmul.f32 %v2041, %v1801
        %v2106 = vmul.f32 %v2042, %v1806
        %v2107 = vmul.f32 %v2043, %v1809
        %v2108 = vmul.f32 %v2044, %v1814
        %v2109 = vmul.f32 %v2045, %v1817
        %v2110 = vmul.f32 %v2046, %v1822
        %v2111 = vmul.f32 %v2047, %v1825
        %v2112 = vmul.f32 %v2048, %v1830
        %v2113 = vmul.f32 %v2049, %v1833
        %v2114 = vmul.f32 %v2050, %v1838
        %v2115 = vmul.f32 %v2051, %v1841
        %v2116 = vmul.f32 %v2052, %v1846
        %v2117 = vmul.f32 %v2053, %v1849
        %v2118 = vmul.f32 %v2054, %v1854
        %v2119 = vmul.f32 %v2055, %v1857
        %v2120 = vmul.f32 %v2056, %v1862
        %v2121 = vmul.f32 %v2057, %v1865
        %v2122 = vmul.f32 %v2058, %v1870
        %v2123 = vmul.f32 %v2059, %v1873
        %v2124 = vmul.f32 %v2060, %v1878
        %v2125 = vmul.f32 %v2061, %v1881
        %v2126 = vmul.f32 %v2062, %v1886
        %v2127 = vmul.f32 %v2063, %v1889
        %v2128 = vmul.f32 %v2064, %v1894
        %v2129 = vmul.f32 %v2065, %v1897
        %v2130 = vmul.f32 %v2066, %v1902
        %v2131 = vmul.f32 %v2067, %v1905
        %v2132 = vmul.f32 %v2068, %v1910
        %v2133 = vmul.f32 %v2069, %v1913
        %v2134 = vmul.f32 %v2070, %v1918
        %v2135 = vmul.f32 %v2071, %v1921
        %v2136 = vmul.f32 %v2072, %v1926
        %v2137 = vmul.f32 %v2073, %v1929
        %v2138 = vmul.f32 %v2074, %v1934
        %v2139 = vmul.f32 %v2075, %v1937
        %v2140 = vmul.f32 %v2076, %v1942
        %v2141 = vmul.f32 %v2077, %v1945
        %v2142 = vmul.f32 %v2078, %v1950
        %v2143 = vmul.f32 %v2079, %v1953
        %v2144 = vmul.f32 %v2080, %v1958
        %v2145 = vmul.f32 %v2081, %v1961
        %v2146 = vmul.f32 %v2082, %v1966
        %v2147 = vmul.f32 %v2083, %v1969
        %v2148 = vmul.f32 %v2084, %v1974
        %v2149 = vmul.f32 %v2085, %v1977
        %v2150 = vmul.f32 %v2086, %v1982
        %v2151 = vmul.f32 %v2087, %v1985
        %v2152 = vmul.f32 %v2088, %v1990
        %v2153 = vmul.f32 %v2089, %v1993
        %v2154 = vmul.f32 %v2090, %v1998
        %v2155 = vmul.f32 %v2091, %v2001
        %v2156 = vmul.f32 %v2092, %v2006
        %v2157 = vmul.f32 %v2093, %v2009
        %v2158 = vmul.f32 %v2094, %v2014
        %v2159 = vmul.f32 %v2095, %v2017
        %v2160 = vmul.f32 %v2096, %v2022
        %v2161 = vmul.f32 %v2097, %v2025
        %v2162 = vmul.f32 %v2098, %v2030
        %v2163 = vmul.f32 %v2099, %v2033
        %v2164 = vpack.c.bf16 %v2101, %v2100
        %v2165 = vpack.c.bf16 %v2103, %v2102
        %v2166 = vpack.c.bf16 %v2105, %v2104
        %v2167 = vpack.c.bf16 %v2107, %v2106
        %v2168 = vpack.c.bf16 %v2109, %v2108
        %v2169 = vpack.c.bf16 %v2111, %v2110
        %v2170 = vpack.c.bf16 %v2113, %v2112
        %v2171 = vpack.c.bf16 %v2115, %v2114
        %v2172 = vpack.c.bf16 %v2117, %v2116
        %v2173 = vpack.c.bf16 %v2119, %v2118
        %v2174 = vpack.c.bf16 %v2121, %v2120
        %v2175 = vpack.c.bf16 %v2123, %v2122
        %v2176 = vpack.c.bf16 %v2125, %v2124
        %v2177 = vpack.c.bf16 %v2127, %v2126
        %v2178 = vpack.c.bf16 %v2129, %v2128
        %v2179 = vpack.c.bf16 %v2131, %v2130
        %v2180 = vpack.c.bf16 %v2133, %v2132
        %v2181 = vpack.c.bf16 %v2135, %v2134
        %v2182 = vpack.c.bf16 %v2137, %v2136
        %v2183 = vpack.c.bf16 %v2139, %v2138
        %v2184 = vpack.c.bf16 %v2141, %v2140
        %v2185 = vpack.c.bf16 %v2143, %v2142
        %v2186 = vpack.c.bf16 %v2145, %v2144
        %v2187 = vpack.c.bf16 %v2147, %v2146
        %v2188 = vpack.c.bf16 %v2149, %v2148
        %v2189 = vpack.c.bf16 %v2151, %v2150
        %v2190 = vpack.c.bf16 %v2153, %v2152
        %v2191 = vpack.c.bf16 %v2155, %v2154
        %v2192 = vpack.c.bf16 %v2157, %v2156
        %v2193 = vpack.c.bf16 %v2159, %v2158
        %v2194 = vpack.c.bf16 %v2161, %v2160
        %v2195 = vpack.c.bf16 %v2163, %v2162
        %v2196 = vld [vmem:[%s8] sm:$0xf]
        %v2197 = vld [vmem:[%s9] sm:$0x1]
        %v2199 = vlaneseq
        %v2200 = vshrl.u32 %v2199, 7
        %v2201 = vsub.s32 0, %v2200
        %v2202 = vrot.slane %v2197, %v2201
        %v2205 = vsel %vm489, %v2164, 0
        %v2208 = vsel %vm489, %v2165, 0
        %v2211 = vsel %vm489, %v2166, 0
        %v2214 = vsel %vm489, %v2167, 0
        %v2217 = vsel %vm489, %v2168, 0
        %v2220 = vsel %vm489, %v2169, 0
        %v2223 = vsel %vm489, %v2170, 0
        %v2226 = vsel %vm489, %v2171, 0
        %v2229 = vsel %vm489, %v2172, 0
        %v2232 = vsel %vm489, %v2173, 0
        %v2235 = vsel %vm489, %v2174, 0
        %v2238 = vsel %vm489, %v2175, 0
        %v2241 = vsel %vm489, %v2176, 0
        %v2244 = vsel %vm489, %v2177, 0
        %v2247 = vsel %vm489, %v2178, 0
        %v2250 = vsel %vm489, %v2179, 0
        %v2253 = vsel %vm489, %v2180, 0
        %v2256 = vsel %vm489, %v2181, 0
        %v2259 = vsel %vm489, %v2182, 0
        %v2262 = vsel %vm489, %v2183, 0
        %v2265 = vsel %vm489, %v2184, 0
        %v2268 = vsel %vm489, %v2185, 0
        %v2271 = vsel %vm489, %v2186, 0
        %v2274 = vsel %vm489, %v2187, 0
        %v2277 = vsel %vm489, %v2188, 0
        %v2280 = vsel %vm489, %v2189, 0
        %v2283 = vsel %vm489, %v2190, 0
        %v2286 = vsel %vm489, %v2191, 0
        %v2289 = vsel %vm489, %v2192, 0
        %v2292 = vsel %vm489, %v2193, 0
        %v2295 = vsel %vm489, %v2194, 0
        %v2298 = vsel %vm489, %v2195, 0
        %v2301 = vsel %vm514, %v2196, 0
        %2303 = vmatprep.subr.bf16.mxu0 0
        %2304 = vmatpush1.bf16.msra.mxu0 %v2301
        %2305 = vmatprep.subr.bf16.mxu0 0
        %2306 = vmatpush1.bf16.msra.mxu0 0
        %2307 = vmatprep.subr.bf16.mxu0 0
        %2308 = vmatpush1.bf16.msra.mxu0 0
        %2309 = vmatprep.subr.bf16.mxu0 0
        %2310 = vmatpush1.bf16.msra.mxu0 0
        %2311 = vmatprep.subr.bf16.mxu0 0
        %2312 = vmatpush1.bf16.msra.mxu0 0
        %2313 = vmatprep.subr.bf16.mxu0 0
        %2314 = vmatpush1.bf16.msra.mxu0 0
        %2315 = vmatprep.subr.bf16.mxu0 0
        %2316 = vmatpush1.bf16.msra.mxu0 0
        %2317 = vmatprep.subr.bf16.mxu0 0
        %2318 = vmatpush1.bf16.msra.mxu0 0
        %2319 = vmatprep.subr.bf16.mxu0 0
        %2320 = vmatpush1.bf16.msra.mxu0 0
        %2321 = vmatprep.subr.bf16.mxu0 0
        %2322 = vmatpush1.bf16.msra.mxu0 0
        %2323 = vmatprep.subr.bf16.mxu0 0
        %2324 = vmatpush1.bf16.msra.mxu0 0
        %2325 = vmatprep.subr.bf16.mxu0 0
        %2326 = vmatpush1.bf16.msra.mxu0 0
        %2327 = vmatprep.subr.bf16.mxu0 0
        %2328 = vmatpush1.bf16.msra.mxu0 0
        %2329 = vmatprep.subr.bf16.mxu0 0
        %2330 = vmatpush1.bf16.msra.mxu0 0
        %2331 = vmatprep.subr.bf16.mxu0 0
        %2332 = vmatpush1.bf16.msra.mxu0 0
        %2333 = vmatprep.subr.bf16.mxu0 0
        %2334 = vmatpush1.bf16.msra.mxu0 0
        %2335 = vmatprep.mubr.bf16.mxu0 0
        %2336 = vmatmul.mubr.bf16.gmra.mrb[0].mxu0 %v2205
        %v2337 = vpop.f32.mrb[0].mxu0
        %v2338 = vadd.f32 %v2202, %v2337
        %v2339 = vpop.f32.mrb[0].mxu0
        %v2340 = vpop.f32.mrb[0].mxu0
        %v2341 = vadd.f32 %v2202, %v2340
        %v2342 = vpop.f32.mrb[0].mxu0
        %2343 = vmatprep.mubr.bf16.mxu0 0
        %2344 = vmatmul.mubr.bf16.gmra.mrb[0].mxu0 %v2208
        %v2345 = vpop.f32.mrb[0].mxu0
        %v2346 = vadd.f32 %v2202, %v2345
        %v2347 = vpop.f32.mrb[0].mxu0
        %v2348 = vpop.f32.mrb[0].mxu0
        %v2349 = vadd.f32 %v2202, %v2348
        %v2350 = vpop.f32.mrb[0].mxu0
        %2351 = vmatprep.mubr.bf16.mxu0 0
        %2352 = vmatmul.mubr.bf16.gmra.mrb[0].mxu0 %v2211
        %v2353 = vpop.f32.mrb[0].mxu0
        %v2354 = vadd.f32 %v2202, %v2353
        %v2355 = vpop.f32.mrb[0].mxu0
        %v2356 = vpop.f32.mrb[0].mxu0
        %v2357 = vadd.f32 %v2202, %v2356
        %v2358 = vpop.f32.mrb[0].mxu0
        %2359 = vmatprep.mubr.bf16.mxu0 0
        %2360 = vmatmul.mubr.bf16.gmra.mrb[0].mxu0 %v2214
        %v2361 = vpop.f32.mrb[0].mxu0
        %v2362 = vadd.f32 %v2202, %v2361
        %v2363 = vpop.f32.mrb[0].mxu0
        %v2364 = vpop.f32.mrb[0].mxu0
        %v2365 = vadd.f32 %v2202, %v2364
        %v2366 = vpop.f32.mrb[0].mxu0
        %2367 = vmatprep.mubr.bf16.mxu0 0
        %2368 = vmatmul.mubr.bf16.gmra.mrb[0].mxu0 %v2217
        %v2369 = vpop.f32.mrb[0].mxu0
        %v2370 = vadd.f32 %v2202, %v2369
        %v2371 = vpop.f32.mrb[0].mxu0
        %v2372 = vpop.f32.mrb[0].mxu0
        %v2373 = vadd.f32 %v2202, %v2372
        %v2374 = vpop.f32.mrb[0].mxu0
        %2375 = vmatprep.mubr.bf16.mxu0 0
        %2376 = vmatmul.mubr.bf16.gmra.mrb[0].mxu0 %v2220
        %v2377 = vpop.f32.mrb[0].mxu0
        %v2378 = vadd.f32 %v2202, %v2377
        %v2379 = vpop.f32.mrb[0].mxu0
        %v2380 = vpop.f32.mrb[0].mxu0
        %v2381 = vadd.f32 %v2202, %v2380
        %v2382 = vpop.f32.mrb[0].mxu0
        %2383 = vmatprep.mubr.bf16.mxu0 0
        %2384 = vmatmul.mubr.bf16.gmra.mrb[0].mxu0 %v2223
        %v2385 = vpop.f32.mrb[0].mxu0
        %v2386 = vadd.f32 %v2202, %v2385
        %v2387 = vpop.f32.mrb[0].mxu0
        %v2388 = vpop.f32.mrb[0].mxu0
        %v2389 = vadd.f32 %v2202, %v2388
        %v2390 = vpop.f32.mrb[0].mxu0
        %2391 = vmatprep.mubr.bf16.mxu0 0
        %2392 = vmatmul.mubr.bf16.gmra.mrb[0].mxu0 %v2226
        %v2393 = vpop.f32.mrb[0].mxu0
        %v2394 = vadd.f32 %v2202, %v2393
        %v2395 = vpop.f32.mrb[0].mxu0
        %v2396 = vpop.f32.mrb[0].mxu0
        %v2397 = vadd.f32 %v2202, %v2396
        %v2398 = vpop.f32.mrb[0].mxu0
        %2399 = vmatprep.mubr.bf16.mxu0 0
        %2400 = vmatmul.mubr.bf16.gmra.mrb[0].mxu0 %v2229
        %v2401 = vpop.f32.mrb[0].mxu0
        %v2402 = vadd.f32 %v2202, %v2401
        %v2403 = vpop.f32.mrb[0].mxu0
        %v2404 = vpop.f32.mrb[0].mxu0
        %v2405 = vadd.f32 %v2202, %v2404
        %v2406 = vpop.f32.mrb[0].mxu0
        %2407 = vmatprep.mubr.bf16.mxu0 0
        %2408 = vmatmul.mubr.bf16.gmra.mrb[0].mxu0 %v2232
        %v2409 = vpop.f32.mrb[0].mxu0
        %v2410 = vadd.f32 %v2202, %v2409
        %v2411 = vpop.f32.mrb[0].mxu0
        %v2412 = vpop.f32.mrb[0].mxu0
        %v2413 = vadd.f32 %v2202, %v2412
        %v2414 = vpop.f32.mrb[0].mxu0
        %2415 = vmatprep.mubr.bf16.mxu0 0
        %2416 = vmatmul.mubr.bf16.gmra.mrb[0].mxu0 %v2235
        %v2417 = vpop.f32.mrb[0].mxu0
        %v2418 = vadd.f32 %v2202, %v2417
        %v2419 = vpop.f32.mrb[0].mxu0
        %v2420 = vpop.f32.mrb[0].mxu0
        %v2421 = vadd.f32 %v2202, %v2420
        %v2422 = vpop.f32.mrb[0].mxu0
        %2423 = vmatprep.mubr.bf16.mxu0 0
        %2424 = vmatmul.mubr.bf16.gmra.mrb[0].mxu0 %v2238
        %v2425 = vpop.f32.mrb[0].mxu0
        %v2426 = vadd.f32 %v2202, %v2425
        %v2427 = vpop.f32.mrb[0].mxu0
        %v2428 = vpop.f32.mrb[0].mxu0
        %v2429 = vadd.f32 %v2202, %v2428
        %v2430 = vpop.f32.mrb[0].mxu0
        %2431 = vmatprep.mubr.bf16.mxu0 0
        %2432 = vmatmul.mubr.bf16.gmra.mrb[0].mxu0 %v2241
        %v2433 = vpop.f32.mrb[0].mxu0
        %v2434 = vadd.f32 %v2202, %v2433
        %v2435 = vpop.f32.mrb[0].mxu0
        %v2436 = vpop.f32.mrb[0].mxu0
        %v2437 = vadd.f32 %v2202, %v2436
        %v2438 = vpop.f32.mrb[0].mxu0
        %2439 = vmatprep.mubr.bf16.mxu0 0
        %2440 = vmatmul.mubr.bf16.gmra.mrb[0].mxu0 %v2244
        %v2441 = vpop.f32.mrb[0].mxu0
        %v2442 = vadd.f32 %v2202, %v2441
        %v2443 = vpop.f32.mrb[0].mxu0
        %v2444 = vpop.f32.mrb[0].mxu0
        %v2445 = vadd.f32 %v2202, %v2444
        %v2446 = vpop.f32.mrb[0].mxu0
        %2447 = vmatprep.mubr.bf16.mxu0 0
        %2448 = vmatmul.mubr.bf16.gmra.mrb[0].mxu0 %v2247
        %v2449 = vpop.f32.mrb[0].mxu0
        %v2450 = vadd.f32 %v2202, %v2449
        %v2451 = vpop.f32.mrb[0].mxu0
        %v2452 = vpop.f32.mrb[0].mxu0
        %v2453 = vadd.f32 %v2202, %v2452
        %v2454 = vpop.f32.mrb[0].mxu0
        %2455 = vmatprep.mubr.bf16.mxu0 0
        %2456 = vmatmul.mubr.bf16.gmra.mrb[0].mxu0 %v2250
        %v2457 = vpop.f32.mrb[0].mxu0
        %v2458 = vadd.f32 %v2202, %v2457
        %v2459 = vpop.f32.mrb[0].mxu0
        %v2460 = vpop.f32.mrb[0].mxu0
        %v2461 = vadd.f32 %v2202, %v2460
        %v2462 = vpop.f32.mrb[0].mxu0
        %2463 = vmatprep.mubr.bf16.mxu0 0
        %2464 = vmatmul.mubr.bf16.gmra.mrb[0].mxu0 %v2253
        %v2465 = vpop.f32.mrb[0].mxu0
        %v2466 = vadd.f32 %v2202, %v2465
        %v2467 = vpop.f32.mrb[0].mxu0
        %v2468 = vpop.f32.mrb[0].mxu0
        %v2469 = vadd.f32 %v2202, %v2468
        %v2470 = vpop.f32.mrb[0].mxu0
        %2471 = vmatprep.mubr.bf16.mxu0 0
        %2472 = vmatmul.mubr.bf16.gmra.mrb[0].mxu0 %v2256
        %v2473 = vpop.f32.mrb[0].mxu0
        %v2474 = vadd.f32 %v2202, %v2473
        %v2475 = vpop.f32.mrb[0].mxu0
        %v2476 = vpop.f32.mrb[0].mxu0
        %v2477 = vadd.f32 %v2202, %v2476
        %v2478 = vpop.f32.mrb[0].mxu0
        %2479 = vmatprep.mubr.bf16.mxu0 0
        %2480 = vmatmul.mubr.bf16.gmra.mrb[0].mxu0 %v2259
        %v2481 = vpop.f32.mrb[0].mxu0
        %v2482 = vadd.f32 %v2202, %v2481
        %v2483 = vpop.f32.mrb[0].mxu0
        %v2484 = vpop.f32.mrb[0].mxu0
        %v2485 = vadd.f32 %v2202, %v2484
        %v2486 = vpop.f32.mrb[0].mxu0
        %2487 = vmatprep.mubr.bf16.mxu0 0
        %2488 = vmatmul.mubr.bf16.gmra.mrb[0].mxu0 %v2262
        %v2489 = vpop.f32.mrb[0].mxu0
        %v2490 = vadd.f32 %v2202, %v2489
        %v2491 = vpop.f32.mrb[0].mxu0
        %v2492 = vpop.f32.mrb[0].mxu0
        %v2493 = vadd.f32 %v2202, %v2492
        %v2494 = vpop.f32.mrb[0].mxu0
        %2495 = vmatprep.mubr.bf16.mxu0 0
        %2496 = vmatmul.mubr.bf16.gmra.mrb[0].mxu0 %v2265
        %v2497 = vpop.f32.mrb[0].mxu0
        %v2498 = vadd.f32 %v2202, %v2497
        %v2499 = vpop.f32.mrb[0].mxu0
        %v2500 = vpop.f32.mrb[0].mxu0
        %v2501 = vadd.f32 %v2202, %v2500
        %v2502 = vpop.f32.mrb[0].mxu0
        %2503 = vmatprep.mubr.bf16.mxu0 0
        %2504 = vmatmul.mubr.bf16.gmra.mrb[0].mxu0 %v2268
        %v2505 = vpop.f32.mrb[0].mxu0
        %v2506 = vadd.f32 %v2202, %v2505
        %v2507 = vpop.f32.mrb[0].mxu0
        %v2508 = vpop.f32.mrb[0].mxu0
        %v2509 = vadd.f32 %v2202, %v2508
        %v2510 = vpop.f32.mrb[0].mxu0
        %2511 = vmatprep.mubr.bf16.mxu0 0
        %2512 = vmatmul.mubr.bf16.gmra.mrb[0].mxu0 %v2271
        %v2513 = vpop.f32.mrb[0].mxu0
        %v2514 = vadd.f32 %v2202, %v2513
        %v2515 = vpop.f32.mrb[0].mxu0
        %v2516 = vpop.f32.mrb[0].mxu0
        %v2517 = vadd.f32 %v2202, %v2516
        %v2518 = vpop.f32.mrb[0].mxu0
        %2519 = vmatprep.mubr.bf16.mxu0 0
        %2520 = vmatmul.mubr.bf16.gmra.mrb[0].mxu0 %v2274
        %v2521 = vpop.f32.mrb[0].mxu0
        %v2522 = vadd.f32 %v2202, %v2521
        %v2523 = vpop.f32.mrb[0].mxu0
        %v2524 = vpop.f32.mrb[0].mxu0
        %v2525 = vadd.f32 %v2202, %v2524
        %v2526 = vpop.f32.mrb[0].mxu0
        %2527 = vmatprep.mubr.bf16.mxu0 0
        %2528 = vmatmul.mubr.bf16.gmra.mrb[0].mxu0 %v2277
        %v2529 = vpop.f32.mrb[0].mxu0
        %v2530 = vadd.f32 %v2202, %v2529
        %v2531 = vpop.f32.mrb[0].mxu0
        %v2532 = vpop.f32.mrb[0].mxu0
        %v2533 = vadd.f32 %v2202, %v2532
        %v2534 = vpop.f32.mrb[0].mxu0
        %2535 = vmatprep.mubr.bf16.mxu0 0
        %2536 = vmatmul.mubr.bf16.gmra.mrb[0].mxu0 %v2280
        %v2537 = vpop.f32.mrb[0].mxu0
        %v2538 = vadd.f32 %v2202, %v2537
        %v2539 = vpop.f32.mrb[0].mxu0
        %v2540 = vpop.f32.mrb[0].mxu0
        %v2541 = vadd.f32 %v2202, %v2540
        %v2542 = vpop.f32.mrb[0].mxu0
        %2543 = vmatprep.mubr.bf16.mxu0 0
        %2544 = vmatmul.mubr.bf16.gmra.mrb[0].mxu0 %v2283
        %v2545 = vpop.f32.mrb[0].mxu0
        %v2546 = vadd.f32 %v2202, %v2545
        %v2547 = vpop.f32.mrb[0].mxu0
        %v2548 = vpop.f32.mrb[0].mxu0
        %v2549 = vadd.f32 %v2202, %v2548
        %v2550 = vpop.f32.mrb[0].mxu0
        %2551 = vmatprep.mubr.bf16.mxu0 0
        %2552 = vmatmul.mubr.bf16.gmra.mrb[0].mxu0 %v2286
        %v2553 = vpop.f32.mrb[0].mxu0
        %v2554 = vadd.f32 %v2202, %v2553
        %v2555 = vpop.f32.mrb[0].mxu0
        %v2556 = vpop.f32.mrb[0].mxu0
        %v2557 = vadd.f32 %v2202, %v2556
        %v2558 = vpop.f32.mrb[0].mxu0
        %2559 = vmatprep.mubr.bf16.mxu0 0
        %2560 = vmatmul.mubr.bf16.gmra.mrb[0].mxu0 %v2289
        %v2561 = vpop.f32.mrb[0].mxu0
        %v2562 = vadd.f32 %v2202, %v2561
        %v2563 = vpop.f32.mrb[0].mxu0
        %v2564 = vpop.f32.mrb[0].mxu0
        %v2565 = vadd.f32 %v2202, %v2564
        %v2566 = vpop.f32.mrb[0].mxu0
        %2567 = vmatprep.mubr.bf16.mxu0 0
        %2568 = vmatmul.mubr.bf16.gmra.mrb[0].mxu0 %v2292
        %v2569 = vpop.f32.mrb[0].mxu0
        %v2570 = vadd.f32 %v2202, %v2569
        %v2571 = vpop.f32.mrb[0].mxu0
        %v2572 = vpop.f32.mrb[0].mxu0
        %v2573 = vadd.f32 %v2202, %v2572
        %v2574 = vpop.f32.mrb[0].mxu0
        %2575 = vmatprep.mubr.bf16.mxu0 0
        %2576 = vmatmul.mubr.bf16.gmra.mrb[0].mxu0 %v2295
        %v2577 = vpop.f32.mrb[0].mxu0
        %v2578 = vadd.f32 %v2202, %v2577
        %v2579 = vpop.f32.mrb[0].mxu0
        %v2580 = vpop.f32.mrb[0].mxu0
        %v2581 = vadd.f32 %v2202, %v2580
        %v2582 = vpop.f32.mrb[0].mxu0
        %2583 = vmatprep.mubr.bf16.mxu0 0
        %2584 = vmatmul.mubr.bf16.gmra.mrb[0].mxu0 %v2298
        %v2585 = vpop.f32.mrb[0].mxu0
        %v2586 = vadd.f32 %v2202, %v2585
        %v2587 = vpop.f32.mrb[0].mxu0
        %v2588 = vpop.f32.mrb[0].mxu0
        %v2589 = vadd.f32 %v2202, %v2588
        %v2590 = vpop.f32.mrb[0].mxu0
        %2591 = vdwg.mxu0
        %v2592 = vmax.f32 %v2338, 0.0
        %v2593 = vmax.f32 %v2341, 0.0
        %v2594 = vmax.f32 %v2346, 0.0
        %v2595 = vmax.f32 %v2349, 0.0
        %v2596 = vmax.f32 %v2354, 0.0
        %v2597 = vmax.f32 %v2357, 0.0
        %v2598 = vmax.f32 %v2362, 0.0
        %v2599 = vmax.f32 %v2365, 0.0
        %v2600 = vmax.f32 %v2370, 0.0
        %v2601 = vmax.f32 %v2373, 0.0
        %v2602 = vmax.f32 %v2378, 0.0
        %v2603 = vmax.f32 %v2381, 0.0
        %v2604 = vmax.f32 %v2386, 0.0
        %v2605 = vmax.f32 %v2389, 0.0
        %v2606 = vmax.f32 %v2394, 0.0
        %v2607 = vmax.f32 %v2397, 0.0
        %v2608 = vmax.f32 %v2402, 0.0
        %v2609 = vmax.f32 %v2405, 0.0
        %v2610 = vmax.f32 %v2410, 0.0
        %v2611 = vmax.f32 %v2413, 0.0
        %v2612 = vmax.f32 %v2418, 0.0
        %v2613 = vmax.f32 %v2421, 0.0
        %v2614 = vmax.f32 %v2426, 0.0
        %v2615 = vmax.f32 %v2429, 0.0
        %v2616 = vmax.f32 %v2434, 0.0
        %v2617 = vmax.f32 %v2437, 0.0
        %v2618 = vmax.f32 %v2442, 0.0
        %v2619 = vmax.f32 %v2445, 0.0
        %v2620 = vmax.f32 %v2450, 0.0
        %v2621 = vmax.f32 %v2453, 0.0
        %v2622 = vmax.f32 %v2458, 0.0
        %v2623 = vmax.f32 %v2461, 0.0
        %v2624 = vmax.f32 %v2466, 0.0
        %v2625 = vmax.f32 %v2469, 0.0
        %v2626 = vmax.f32 %v2474, 0.0
        %v2627 = vmax.f32 %v2477, 0.0
        %v2628 = vmax.f32 %v2482, 0.0
        %v2629 = vmax.f32 %v2485, 0.0
        %v2630 = vmax.f32 %v2490, 0.0
        %v2631 = vmax.f32 %v2493, 0.0
        %v2632 = vmax.f32 %v2498, 0.0
        %v2633 = vmax.f32 %v2501, 0.0
        %v2634 = vmax.f32 %v2506, 0.0
        %v2635 = vmax.f32 %v2509, 0.0
        %v2636 = vmax.f32 %v2514, 0.0
        %v2637 = vmax.f32 %v2517, 0.0
        %v2638 = vmax.f32 %v2522, 0.0
        %v2639 = vmax.f32 %v2525, 0.0
        %v2640 = vmax.f32 %v2530, 0.0
        %v2641 = vmax.f32 %v2533, 0.0
        %v2642 = vmax.f32 %v2538, 0.0
        %v2643 = vmax.f32 %v2541, 0.0
        %v2644 = vmax.f32 %v2546, 0.0
        %v2645 = vmax.f32 %v2549, 0.0
        %v2646 = vmax.f32 %v2554, 0.0
        %v2647 = vmax.f32 %v2557, 0.0
        %v2648 = vmax.f32 %v2562, 0.0
        %v2649 = vmax.f32 %v2565, 0.0
        %v2650 = vmax.f32 %v2570, 0.0
        %v2651 = vmax.f32 %v2573, 0.0
        %v2652 = vmax.f32 %v2578, 0.0
        %v2653 = vmax.f32 %v2581, 0.0
        %v2654 = vmax.f32 %v2586, 0.0
        %v2655 = vmax.f32 %v2589, 0.0
        %v2656 = vsel %vm1650, %v2592, -inf
        %v2657 = vsel %vm1650, %v2608, -inf
        %v2658 = vmax.f32 %v2656, %v2657
        %v2659 = vsel %vm1650, %v2624, -inf
        %v2660 = vmax.f32 %v2658, %v2659
        %v2661 = vsel %vm1650, %v2640, -inf
        %v2662 = vmax.f32 %v2660, %v2661
        %v2663 = vsel %vm1650, %v2593, -inf
        %v2664 = vsel %vm1650, %v2609, -inf
        %v2665 = vmax.f32 %v2663, %v2664
        %v2666 = vsel %vm1650, %v2625, -inf
        %v2667 = vmax.f32 %v2665, %v2666
        %v2668 = vsel %vm1650, %v2641, -inf
        %v2669 = vmax.f32 %v2667, %v2668
        %v2670 = vsel %vm1650, %v2594, -inf
        %v2671 = vsel %vm1650, %v2610, -inf
        %v2672 = vmax.f32 %v2670, %v2671
        %v2673 = vsel %vm1650, %v2626, -inf
        %v2674 = vmax.f32 %v2672, %v2673
        %v2675 = vsel %vm1650, %v2642, -inf
        %v2676 = vmax.f32 %v2674, %v2675
        %v2677 = vsel %vm1650, %v2595, -inf
        %v2678 = vsel %vm1650, %v2611, -inf
        %v2679 = vmax.f32 %v2677, %v2678
        %v2680 = vsel %vm1650, %v2627, -inf
        %v2681 = vmax.f32 %v2679, %v2680
        %v2682 = vsel %vm1650, %v2643, -inf
        %v2683 = vmax.f32 %v2681, %v2682
        %v2684 = vsel %vm1650, %v2596, -inf
        %v2685 = vsel %vm1650, %v2612, -inf
        %v2686 = vmax.f32 %v2684, %v2685
        %v2687 = vsel %vm1650, %v2628, -inf
        %v2688 = vmax.f32 %v2686, %v2687
        %v2689 = vsel %vm1650, %v2644, -inf
        %v2690 = vmax.f32 %v2688, %v2689
        %v2691 = vsel %vm1650, %v2597, -inf
        %v2692 = vsel %vm1650, %v2613, -inf
        %v2693 = vmax.f32 %v2691, %v2692
        %v2694 = vsel %vm1650, %v2629, -inf
        %v2695 = vmax.f32 %v2693, %v2694
        %v2696 = vsel %vm1650, %v2645, -inf
        %v2697 = vmax.f32 %v2695, %v2696
        %v2698 = vsel %vm1650, %v2598, -inf
        %v2699 = vsel %vm1650, %v2614, -inf
        %v2700 = vmax.f32 %v2698, %v2699
        %v2701 = vsel %vm1650, %v2630, -inf
        %v2702 = vmax.f32 %v2700, %v2701
        %v2703 = vsel %vm1650, %v2646, -inf
        %v2704 = vmax.f32 %v2702, %v2703
        %v2705 = vsel %vm1650, %v2599, -inf
        %v2706 = vsel %vm1650, %v2615, -inf
        %v2707 = vmax.f32 %v2705, %v2706
        %v2708 = vsel %vm1650, %v2631, -inf
        %v2709 = vmax.f32 %v2707, %v2708
        %v2710 = vsel %vm1650, %v2647, -inf
        %v2711 = vmax.f32 %v2709, %v2710
        %v2712 = vsel %vm1650, %v2600, -inf
        %v2713 = vsel %vm1650, %v2616, -inf
        %v2714 = vmax.f32 %v2712, %v2713
        %v2715 = vsel %vm1650, %v2632, -inf
        %v2716 = vmax.f32 %v2714, %v2715
        %v2717 = vsel %vm1650, %v2648, -inf
        %v2718 = vmax.f32 %v2716, %v2717
        %v2719 = vsel %vm1650, %v2601, -inf
        %v2720 = vsel %vm1650, %v2617, -inf
        %v2721 = vmax.f32 %v2719, %v2720
        %v2722 = vsel %vm1650, %v2633, -inf
        %v2723 = vmax.f32 %v2721, %v2722
        %v2724 = vsel %vm1650, %v2649, -inf
        %v2725 = vmax.f32 %v2723, %v2724
        %v2726 = vsel %vm1650, %v2602, -inf
        %v2727 = vsel %vm1650, %v2618, -inf
        %v2728 = vmax.f32 %v2726, %v2727
        %v2729 = vsel %vm1650, %v2634, -inf
        %v2730 = vmax.f32 %v2728, %v2729
        %v2731 = vsel %vm1650, %v2650, -inf
        %v2732 = vmax.f32 %v2730, %v2731
        %v2733 = vsel %vm1650, %v2603, -inf
        %v2734 = vsel %vm1650, %v2619, -inf
        %v2735 = vmax.f32 %v2733, %v2734
        %v2736 = vsel %vm1650, %v2635, -inf
        %v2737 = vmax.f32 %v2735, %v2736
        %v2738 = vsel %vm1650, %v2651, -inf
        %v2739 = vmax.f32 %v2737, %v2738
        %v2740 = vsel %vm1650, %v2604, -inf
        %v2741 = vsel %vm1650, %v2620, -inf
        %v2742 = vmax.f32 %v2740, %v2741
        %v2743 = vsel %vm1650, %v2636, -inf
        %v2744 = vmax.f32 %v2742, %v2743
        %v2745 = vsel %vm1650, %v2652, -inf
        %v2746 = vmax.f32 %v2744, %v2745
        %v2747 = vsel %vm1650, %v2605, -inf
        %v2748 = vsel %vm1650, %v2621, -inf
        %v2749 = vmax.f32 %v2747, %v2748
        %v2750 = vsel %vm1650, %v2637, -inf
        %v2751 = vmax.f32 %v2749, %v2750
        %v2752 = vsel %vm1650, %v2653, -inf
        %v2753 = vmax.f32 %v2751, %v2752
        %v2754 = vsel %vm1650, %v2606, -inf
        %v2755 = vsel %vm1650, %v2622, -inf
        %v2756 = vmax.f32 %v2754, %v2755
        %v2757 = vsel %vm1650, %v2638, -inf
        %v2758 = vmax.f32 %v2756, %v2757
        %v2759 = vsel %vm1650, %v2654, -inf
        %v2760 = vmax.f32 %v2758, %v2759
        %v2761 = vsel %vm1650, %v2607, -inf
        %v2762 = vsel %vm1650, %v2623, -inf
        %v2763 = vmax.f32 %v2761, %v2762
        %v2764 = vsel %vm1650, %v2639, -inf
        %v2765 = vmax.f32 %v2763, %v2764
        %v2766 = vsel %vm1650, %v2655, -inf
        %v2767 = vmax.f32 %v2765, %v2766
        %2784 = vrot.lane.b32.xlu0 %v2662, 24
        %v2785 = vpop.permute.xlu0 %2784
        %2786 = vrot.lane.b32.xlu0 %v2669, 24
        %v2787 = vpop.permute.xlu0 %2786
        %2788 = vrot.lane.b32.xlu0 %v2676, 24
        %v2789 = vpop.permute.xlu0 %2788
        %2790 = vrot.lane.b32.xlu0 %v2683, 24
        %v2791 = vpop.permute.xlu0 %2790
        %2792 = vrot.lane.b32.xlu0 %v2690, 24
        %v2793 = vpop.permute.xlu0 %2792
        %2794 = vrot.lane.b32.xlu0 %v2697, 24
        %v2795 = vpop.permute.xlu0 %2794
        %2796 = vrot.lane.b32.xlu0 %v2704, 24
        %v2797 = vpop.permute.xlu0 %2796
        %2798 = vrot.lane.b32.xlu0 %v2711, 24
        %v2799 = vpop.permute.xlu0 %2798
        %2800 = vrot.lane.b32.xlu0 %v2718, 24
        %v2801 = vpop.permute.xlu0 %2800
        %2802 = vrot.lane.b32.xlu0 %v2725, 24
        %v2803 = vpop.permute.xlu0 %2802
        %2804 = vrot.lane.b32.xlu0 %v2732, 24
        %v2805 = vpop.permute.xlu0 %2804
        %2806 = vrot.lane.b32.xlu0 %v2739, 24
        %v2807 = vpop.permute.xlu0 %2806
        %2808 = vrot.lane.b32.xlu0 %v2746, 24
        %v2809 = vpop.permute.xlu0 %2808
        %2810 = vrot.lane.b32.xlu0 %v2753, 24
        %v2811 = vpop.permute.xlu0 %2810
        %2812 = vrot.lane.b32.xlu0 %v2760, 24
        %v2813 = vpop.permute.xlu0 %2812
        %2814 = vrot.lane.b32.xlu0 %v2767, 24
        %v2815 = vpop.permute.xlu0 %2814
        %v2832 = vadd.f32 %v615, %v2785
        %v2833 = vadd.f32 %v616, %v2787
        %v2834 = vadd.f32 %v617, %v2789
        %v2835 = vadd.f32 %v618, %v2791
        %v2836 = vadd.f32 %v619, %v2793
        %v2837 = vadd.f32 %v620, %v2795
        %v2838 = vadd.f32 %v621, %v2797
        %v2839 = vadd.f32 %v622, %v2799
        %v2840 = vadd.f32 %v623, %v2801
        %v2841 = vadd.f32 %v624, %v2803
        %v2842 = vadd.f32 %v625, %v2805
        %v2843 = vadd.f32 %v626, %v2807
        %v2844 = vadd.f32 %v627, %v2809
        %v2845 = vadd.f32 %v628, %v2811
        %v2846 = vadd.f32 %v629, %v2813
        %v2847 = vadd.f32 %v630, %v2815
        %2864 = vrot.lane.b32.xlu0 %v2832, 104
        %v2865 = vpop.permute.xlu0 %2864
        %2866 = vrot.lane.b32.xlu0 %v2833, 104
        %v2867 = vpop.permute.xlu0 %2866
        %2868 = vrot.lane.b32.xlu0 %v2834, 104
        %v2869 = vpop.permute.xlu0 %2868
        %2870 = vrot.lane.b32.xlu0 %v2835, 104
        %v2871 = vpop.permute.xlu0 %2870
        %2872 = vrot.lane.b32.xlu0 %v2836, 104
        %v2873 = vpop.permute.xlu0 %2872
        %2874 = vrot.lane.b32.xlu0 %v2837, 104
        %v2875 = vpop.permute.xlu0 %2874
        %2876 = vrot.lane.b32.xlu0 %v2838, 104
        %v2877 = vpop.permute.xlu0 %2876
        %2878 = vrot.lane.b32.xlu0 %v2839, 104
        %v2879 = vpop.permute.xlu0 %2878
        %2880 = vrot.lane.b32.xlu0 %v2840, 104
        %v2881 = vpop.permute.xlu0 %2880
        %2882 = vrot.lane.b32.xlu0 %v2841, 104
        %v2883 = vpop.permute.xlu0 %2882
        %2884 = vrot.lane.b32.xlu0 %v2842, 104
        %v2885 = vpop.permute.xlu0 %2884
        %2886 = vrot.lane.b32.xlu0 %v2843, 104
        %v2887 = vpop.permute.xlu0 %2886
        %2888 = vrot.lane.b32.xlu0 %v2844, 104
        %v2889 = vpop.permute.xlu0 %2888
        %2890 = vrot.lane.b32.xlu0 %v2845, 104
        %v2891 = vpop.permute.xlu0 %2890
        %2892 = vrot.lane.b32.xlu0 %v2846, 104
        %v2893 = vpop.permute.xlu0 %2892
        %2894 = vrot.lane.b32.xlu0 %v2847, 104
        %v2895 = vpop.permute.xlu0 %2894
        %2912 = vxpose.xlu0.b32.start [1/16] %v2865, 128
        %2913 = vxpose.xlu0.b32.cont [2/16] %v2867, 128
        %2914 = vxpose.xlu0.b32.cont [3/16] %v2869, 128
        %2915 = vxpose.xlu0.b32.cont [4/16] %v2871, 128
        %2916 = vxpose.xlu0.b32.cont [5/16] %v2873, 128
        %2917 = vxpose.xlu0.b32.cont [6/16] %v2875, 128
        %2918 = vxpose.xlu0.b32.cont [7/16] %v2877, 128
        %2919 = vxpose.xlu0.b32.cont [8/16] %v2879, 128
        %2920 = vxpose.xlu0.b32.cont [9/16] %v2881, 128
        %2921 = vxpose.xlu0.b32.cont [10/16] %v2883, 128
        %2922 = vxpose.xlu0.b32.cont [11/16] %v2885, 128
        %2923 = vxpose.xlu0.b32.cont [12/16] %v2887, 128
        %2924 = vxpose.xlu0.b32.cont [13/16] %v2889, 128
        %2925 = vxpose.xlu0.b32.cont [14/16] %v2891, 128
        %2926 = vxpose.xlu0.b32.cont [15/16] %v2893, 128
        %2927 = vxpose.xlu0.b32.end [16/16] %v2895, 128
        %v2928 = vpop.trf.xlu0
        %v2929 = vpop.trf.xlu0
        %v2930 = vpop.trf.xlu0
        %v2931 = vpop.trf.xlu0
        %v2932 = vpop.trf.xlu0
        %v2933 = vpop.trf.xlu0
        %v2934 = vpop.trf.xlu0
        %v2935 = vpop.trf.xlu0
        %v2936 = vpop.trf.xlu0
        %v2937 = vpop.trf.xlu0
        %v2938 = vpop.trf.xlu0
        %v2939 = vpop.trf.xlu0
        %v2940 = vpop.trf.xlu0
        %v2941 = vpop.trf.xlu0
        %v2942 = vpop.trf.xlu0
        %v2943 = vpop.trf.xlu0
        %2944 = vst [vmem:[%s403] sm:$0xff] %v2928
        %2945 = vst [vmem:[%s403 + $0x8] sm:$0xff] %v2929
        %s2946 = sand.u32 %s270, 1
        %s2947 = scalar_lea.sflag [#allocation3], %s2946
        %s2948 = sand.u32 %s270, 1
        %s2949 = smul.addr %s2948, 16
        %s2950 = scalar_lea.vmem [#allocation2], %s2949
        // Predicated region
        $region61: #{tpu_custom_call.1} parent=59 // pred_check
          %p2951 = pneg %p280
        $region62: #{tpu_custom_call.1} parent=59 // pred_check_branch
          %2953 = sbr.rel (%p2951) target = $region64
        $region63: #{tpu_custom_call.1} parent=59 // pred_region
          %s2955 = ssub.s32 256, 256
          %2956 = vsyncadd %s2947, %s2955
          %s2957 = smul.addr %s28, 2
          %s2958 = sadd.s32 %s29, %s2957
          %s2959 = smul.addr %s2958, 128
          %s2960 = scalar_lea.hbm %s10, %s2959
          %s2961 = sshll.u32 %s2950, 4
          %s2962 = int_to_ptr.vmem [resolvable:$true] %s2961
          %2967 = dma.vmem_to_hbm [thread:$0]  %s2962, 256, %s2960, %s2947, 128, 128, 8
        $region64: #{tpu_custom_call.1} parent=59 // pred_fallthru
          _
      $region60: #{tpu_custom_call.1} parent=5 // pred_fallthru
        _
      %p2968 = scmp.le.s32.totalorder 2, %s19
      // Predicated region
      $region65: #{tpu_custom_call.1} parent=5 // pred_check
        %p2969 = pneg %p2968
      $region66: #{tpu_custom_call.1} parent=5 // pred_check_branch
        %2971 = sbr.rel (%p2969) target = $region68
      $region67: #{tpu_custom_call.1} parent=5 // pred_region
        %s2972 = ssub.s32 %s19, 2
        // Predicated region
        $region69: #{tpu_custom_call.1} parent=67 // pred_check
          %p2973 = pneg %p286
        $region70: #{tpu_custom_call.1} parent=67 // pred_check_branch
          %2975 = sbr.rel (%p2973) target = $region72
        $region71: #{tpu_custom_call.1} parent=67 // pred_region
          %s2976 = sand.u32 %s271, 1
          %s2977 = scalar_lea.sflag [#allocation3], %s2976
          %s2978 = sand.u32 %s271, 1
          %s2979 = smul.addr %s2978, 16
          %s2980 = scalar_lea.vmem [#allocation2], %s2979
          %2981 = dma.done %s2977, 256
        $region72: #{tpu_custom_call.1} parent=67 // pred_fallthru
          _
      $region68: #{tpu_custom_call.1} parent=5 // pred_fallthru
        _
    $region6: #{tpu_custom_call.1} parent=1 // loop_footer
      %s23 = sadd.s32 1, %s19
    $region7: #{tpu_custom_call.1} parent=1 // loop_footer_branch
      %18 = sbr.rel target = $region3
    $region8: #{tpu_custom_call.1} parent=1 // loop_exit
      _
    %2982 = vsyncpa [#allocation3], 1
    %s2983 = scalar_lea.sflag [#allocation3], 1
    %2984 = vsyncpa %s2983, 1

</llo_original>
